<compile_context>
chip_gen: v7x
topology: tpu7x:2x2x1
jax: 0.10.0
libtpu: 0.0.40
codegen_flags: <defaults>
</compile_context>

<pallas_src>
import jax
import jax.numpy as jnp
from jax import lax
from jax.experimental import pallas as pl
from jax.experimental.pallas import tpu as pltpu

EPS = 1e-5                             # nn.BatchNorm2d default eps
MXU_DTYPE = jnp.float32                # bf16 on v6e/v7x for large C (keep f32 acc)
_VMEM_LIMIT_BYTES = 32 * 1024 * 1024   # conservative for v5e/v6e/v7x scoped VMEM


def _pick_nb(n, c):
    """Batch images per grid step: aim for Nb*C >= 8 sublanes, Nb | N."""
    nb = min(n, max(1, (8 + c - 1) // c))
    while n % nb:
        nb -= 1
    return nb


# -------- fused conv3x3 + BN(train stats) + [residual] + ReLU kernel -------- #

def _make_kernel(*, H, W, Cin, Cout, Nb, N, PAD0, has_residual):
    HW = H * W
    inv_m = 1.0 / (N * HW)

    def kernel(*refs):
        if has_residual:
            (x_ref, w_ref, mk_ref, g_ref, b_ref, r_ref,
             o_ref, pad_ref, stk_ref) = refs
        else:
            (x_ref, w_ref, mk_ref, g_ref, b_ref,
             o_ref, pad_ref, stk_ref) = refs
            r_ref = None

        i = pl.program_id(0)

        # Zero the padded scratch once: everything outside the data region
        # stays zero for the whole grid (it provides the H-boundary padding).
        @pl.when(i == 0)
        def _init():
            pad_ref[...] = jnp.zeros_like(pad_ref)

        x = x_ref[...]                                    # (Nb, Cin, HW), lane-dense
        # Hoisted source-side W-boundary masks (2 multiplies per step):
        #   kw=0 taps read the LEFT neighbour  -> zero source column W-1
        #   kw=2 taps read the RIGHT neighbour -> zero source column 0
        m_l = mk_ref[0:1, :].reshape(1, 1, HW)
        m_r = mk_ref[1:2, :].reshape(1, 1, HW)
        # Three padded variants, data stored at the 128-aligned offset PAD0.
        pad_ref[0, :, :, PAD0:PAD0 + HW] = x * m_l        # sources for kw=0 taps
        pad_ref[1, :, :, PAD0:PAD0 + HW] = x              # sources for kw=1 taps
        pad_ref[2, :, :, PAD0:PAD0 + HW] = x * m_r        # sources for kw=2 taps

        # Assemble the merged-K operand: 9 statically shifted (Cin, HW) slices
        # stacked along K -> (Nb, 9*Cin, HW).
        for t in range(9):
            kh, kw = divmod(t, 3)
            off = PAD0 - (W + 1) + kh * W + kw            # static offset
            stk_ref[:, t * Cin:(t + 1) * Cin, :] = pad_ref[kw, :, :, off:off + HW]

        # One MXU matmul per image (K = 9*Cin), f32 accumulation.
        w = w_ref[...].astype(MXU_DTYPE)                  # (Cout, 9*Cin)
        for n in range(Nb):
            y_n = jnp.dot(w, stk_ref[n].astype(MXU_DTYPE),
                          preferred_element_type=jnp.float32)    # (Cout, HW)
            o_ref[i * Nb + n] = y_n                       # into resident output

        # Last step: finalize BatchNorm training statistics over the whole
        # (resident, f32) conv output and apply BN (+ residual) + ReLU.
        @pl.when(i == pl.num_programs(0) - 1)
        def _finalize():
            y = o_ref[...]                                # (N, Cout, HW)
            mean = jnp.sum(jnp.sum(y, axis=2, keepdims=True),
                           axis=0, keepdims=True) * inv_m         # (1, Cout, 1)
            d = y - mean
            var = jnp.sum(jnp.sum(d * d, axis=2, keepdims=True),
                          axis=0, keepdims=True) * inv_m          # biased var
            scale = g_ref[...].reshape(1, Cout, 1) * lax.rsqrt(var + EPS)
            shift = b_ref[...].reshape(1, Cout, 1) - mean * scale
            z = y * scale + shift
            if has_residual:
                z = z + r_ref[...]
            o_ref[...] = jnp.maximum(z, 0.0)

    return kernel


def _fused_conv_bn_act(x, w_merged, masks, gamma, beta, residual=None, *, H, W):
    """conv3x3(pad=1, stride=1, no bias) -> BN(batch stats) [-> +residual] -> ReLU.

    x:        (N, Cin, H*W) f32, lane-dense.
    w_merged: (Cout, 9*Cin) with K ordered (kh*3 + kw)*Cin + cin.
    masks:    (2, H*W) f32 source-side column masks.
    gamma/beta: (Cout, 1) f32.
    residual: optional (N, Cout, H*W) f32 added before the final ReLU.
    """
    N, Cin, HW = x.shape
    Cout = w_merged.shape[0]
    Nb = _pick_nb(N, Cin)
    PAD0 = ((W + 1 + 127) // 128) * 128        # aligned data offset, >= W+1
    PADL = 2 * PAD0 + HW

    kernel = _make_kernel(H=H, W=W, Cin=Cin, Cout=Cout, Nb=Nb, N=N,
                          PAD0=PAD0, has_residual=residual is not None)

    row = pl.BlockSpec((Cout, 1), lambda i: (0, 0))
    in_specs = [pl.BlockSpec((Nb, Cin, HW), lambda i: (i, 0, 0)),
                pl.BlockSpec((Cout, 9 * Cin), lambda i: (0, 0)),
                pl.BlockSpec((2, HW), lambda i: (0, 0)),
                row, row]
    args = [x, w_merged, masks, gamma, beta]
    if residual is not None:
        # Needed only on the finalize step -> keep it fully resident.
        in_specs.append(pl.BlockSpec((N, Cout, HW), lambda i: (0, 0, 0)))
        args.append(residual)

    return pl.pallas_call(
        kernel,
        out_shape=jax.ShapeDtypeStruct((N, Cout, HW), jnp.float32),
        grid=(N // Nb,),
        in_specs=in_specs,
        # Constant index map -> output stays resident in VMEM across the grid
        # and is written back to HBM exactly once.
        out_specs=pl.BlockSpec((N, Cout, HW), lambda i: (0, 0, 0)),
        scratch_shapes=[pltpu.VMEM((3, Nb, Cin, PADL), jnp.float32),   # padded rows
                        pltpu.VMEM((Nb, 9 * Cin, HW), jnp.float32)],   # merged-K operand
        compiler_params=pltpu.CompilerParams(
            dimension_semantics=("arbitrary",),   # stats + resident output
            vmem_limit_bytes=_VMEM_LIMIT_BYTES),
    )(*args)


# ------------------------------ ResidualBlock ------------------------------- #

def residual_block(x_nchw, w1, g1, b1, w2, g2, b2):
    """Forward pass of ResidualBlock (stride=1, downsample=None, identity shortcut)."""
    N, Cin, H, W = x_nchw.shape
    Cout = w1.shape[0]
    HW = H * W
    x = x_nchw.astype(jnp.float32).reshape(N, Cin, HW)     # free reshape, no pad

    def merge_w(w):   # OIHW -> (Cout, 9*Cin), K ordered (kh*3 + kw)*Cin + cin
        o, c = w.shape[0], w.shape[1]
        return jnp.transpose(w, (0, 2, 3, 1)).reshape(o, 9 * c)

    col = jnp.arange(HW, dtype=jnp.int32) % W
    # Source-side column-validity masks (see kernel comment).
    masks = jnp.stack([col != W - 1, col != 0]).astype(jnp.float32)   # (2, HW)

    # conv1 -> bn1 -> relu  (single fused kernel)
    h1 = _fused_conv_bn_act(x, merge_w(w1), masks, g1, b1, H=H, W=W)
    # conv2 -> bn2 -> +residual -> relu  (single fused kernel, identity shortcut)
    out = _fused_conv_bn_act(h1, merge_w(w2), masks, g2, b2, residual=x, H=H, W=W)

    return out.reshape(N, Cout, H, W)                       # NCHW


# --------------------------- pure-JAX reference ----------------------------- #

def _bn_train_ref(y, gamma, beta):
    m = jnp.mean(y, axis=(0, 2, 3), keepdims=True)
    v = jnp.mean((y - m) ** 2, axis=(0, 2, 3), keepdims=True)
    g = gamma.reshape(1, -1, 1, 1)
    b = beta.reshape(1, -1, 1, 1)
    return (y - m) * lax.rsqrt(v + EPS) * g + b


def residual_block_ref(x, w1, g1, b1, w2, g2, b2):
    dn = ("NCHW", "OIHW", "NCHW")
    conv = lambda a, w: lax.conv_general_dilated(
        a, w, window_strides=(1, 1), padding=((1, 1), (1, 1)),
        dimension_numbers=dn, precision=lax.Precision.HIGHEST)
    h = jax.nn.relu(_bn_train_ref(conv(x, w1), g1, b1))
    out = _bn_train_ref(conv(h, w2), g2, b2)
    return jax.nn.relu(out + x)


# ----------------------------------- main ----------------------------------- #

if __name__ == "__main__":
    N, C, H, W = 2, 4, 16, 16          # in_channels == out_channels, stride=1
    key = jax.random.PRNGKey(0)
    kx, k1, k2 = jax.random.split(key, 3)

    x = jax.random.normal(kx, (N, C, H, W), dtype=jnp.float32)
    # conv3x3 weights (OIHW), bias=False
    w1 = 0.1 * jax.random.normal(k1, (C, C, 3, 3), dtype=jnp.float32)
    w2 = 0.1 * jax.random.normal(k2, (C, C, 3, 3), dtype=jnp.float32)
    # nn.BatchNorm2d default init: weight=1, bias=0 (stored channel-major (C,1))
    g1 = jnp.ones((C, 1), jnp.float32); b1 = jnp.zeros((C, 1), jnp.float32)
    g2 = jnp.ones((C, 1), jnp.float32); b2 = jnp.zeros((C, 1), jnp.float32)

    fwd = jax.jit(residual_block)
    out = jax.block_until_ready(fwd(x, w1, g1, b1, w2, g2, b2))

    ref = residual_block_ref(x, w1, g1[:, 0], b1[:, 0], w2, g2[:, 0], b2[:, 0])
    assert out.shape == (N, C, H, W)
    err = float(jnp.max(jnp.abs(out - ref)))
    assert jnp.allclose(out, ref, rtol=1e-3, atol=1e-3), f"max abs err {err}"

    print("KERNEL_OK")
</pallas_src>

<mosaic_0001>
module attributes {stable_mosaic.version = 11 : i64} {
  func.func @kernel(%arg0: i32, %arg1: memref<2x4x256xf32, #tpu.memory_space<vmem>>, %arg2: memref<4x36xf32, #tpu.memory_space<vmem>>, %arg3: memref<2x256xf32, #tpu.memory_space<vmem>>, %arg4: memref<4x1xf32, #tpu.memory_space<vmem>>, %arg5: memref<4x1xf32, #tpu.memory_space<vmem>>, %arg6: memref<2x4x256xf32, #tpu.memory_space<vmem>>, %arg7: memref<3x2x4x512xf32, #tpu.memory_space<vmem>>, %arg8: memref<2x36x256xf32, #tpu.memory_space<vmem>>) attributes {dimension_semantics = [#tpu.dimension_semantics<arbitrary>], iteration_bounds = array<i64: 1>, scalar_prefetch = 0 : i64, scratch_operands = 2 : i64, tpu.core_type = #tpu.core_type<tc>, window_params = [{transform_indices = @transform_0, window_bounds = array<i64: 2, 4, 256>}, {pipeline_mode = #tpu.pipeline_mode<synchronous>, transform_indices = @transform_1, window_bounds = array<i64: 4, 36>}, {pipeline_mode = #tpu.pipeline_mode<synchronous>, transform_indices = @transform_2, window_bounds = array<i64: 2, 256>}, {pipeline_mode = #tpu.pipeline_mode<synchronous>, transform_indices = @transform_3, window_bounds = array<i64: 4, 1>}, {pipeline_mode = #tpu.pipeline_mode<synchronous>, transform_indices = @transform_4, window_bounds = array<i64: 4, 1>}, {pipeline_mode = #tpu.pipeline_mode<synchronous>, transform_indices = @transform_5, window_bounds = array<i64: 2, 4, 256>}]} {
    %c0_i32 = arith.constant 0 : i32
    %0 = arith.cmpi eq, %arg0, %c0_i32 : i32
    %1 = arith.extui %0 : i1 to i32
    %c0_i32_0 = arith.constant 0 : i32
    %2 = arith.cmpi ne, %1, %c0_i32_0 : i32
    scf.if %2 {
      %cst_80 = arith.constant 0.000000e+00 : f32
      %70 = vector.broadcast %cst_80 : f32 to vector<3x2x4x512xf32>
      %c0_81 = arith.constant 0 : index
      %c0_82 = arith.constant 0 : index
      %c0_83 = arith.constant 0 : index
      %c0_84 = arith.constant 0 : index
      %71 = vector.load %arg7[%c0_81, %c0_82, %c0_83, %c0_84] : memref<3x2x4x512xf32, #tpu.memory_space<vmem>>, vector<3x2x4x512xf32>
      tpu.vector_store %arg7[%c0_81, %c0_82, %c0_83, %c0_84], %70 {strides = array<i32>} : memref<3x2x4x512xf32, #tpu.memory_space<vmem>>, vector<3x2x4x512xf32>,
    } else {
    }
    %c0 = arith.constant 0 : index
    %c0_1 = arith.constant 0 : index
    %c0_2 = arith.constant 0 : index
    %3 = vector.load %arg1[%c0, %c0_1, %c0_2] : memref<2x4x256xf32, #tpu.memory_space<vmem>>, vector<2x4x256xf32>
    %c0_3 = arith.constant 0 : index
    %c0_4 = arith.constant 0 : index
    %4 = vector.load %arg3[%c0_3, %c0_4] : memref<2x256xf32, #tpu.memory_space<vmem>>, vector<1x256xf32>
    %5 = vector.shape_cast %4 : vector<1x256xf32> to vector<1x1x256xf32>
    %c1 = arith.constant 1 : index
    %c0_5 = arith.constant 0 : index
    %6 = vector.load %arg3[%c1, %c0_5] : memref<2x256xf32, #tpu.memory_space<vmem>>, vector<1x256xf32>
    %7 = vector.shape_cast %6 : vector<1x256xf32> to vector<1x1x256xf32>
    %8 = vector.broadcast %5 : vector<1x1x256xf32> to vector<2x4x256xf32>
    %9 = arith.mulf %3, %8 : vector<2x4x256xf32>
    %c0_6 = arith.constant 0 : index
    %c0_7 = arith.constant 0 : index
    %c0_8 = arith.constant 0 : index
    %c128 = arith.constant 128 : index
    %10 = vector.load %arg7[%c0_6, %c0_7, %c0_8, %c128] : memref<3x2x4x512xf32, #tpu.memory_space<vmem>>, vector<1x2x4x256xf32>
    %11 = vector.shape_cast %10 : vector<1x2x4x256xf32> to vector<2x4x256xf32>
    %12 = vector.shape_cast %9 : vector<2x4x256xf32> to vector<1x2x4x256xf32>
    tpu.vector_store %arg7[%c0_6, %c0_7, %c0_8, %c128], %12 {strides = array<i32>} : memref<3x2x4x512xf32, #tpu.memory_space<vmem>>, vector<1x2x4x256xf32>,
    %c1_9 = arith.constant 1 : index
    %c0_10 = arith.constant 0 : index
    %c0_11 = arith.constant 0 : index
    %c128_12 = arith.constant 128 : index
    %13 = vector.load %arg7[%c1_9, %c0_10, %c0_11, %c128_12] : memref<3x2x4x512xf32, #tpu.memory_space<vmem>>, vector<1x2x4x256xf32>
    %14 = vector.shape_cast %13 : vector<1x2x4x256xf32> to vector<2x4x256xf32>
    %15 = vector.shape_cast %3 : vector<2x4x256xf32> to vector<1x2x4x256xf32>
    tpu.vector_store %arg7[%c1_9, %c0_10, %c0_11, %c128_12], %15 {strides = array<i32>} : memref<3x2x4x512xf32, #tpu.memory_space<vmem>>, vector<1x2x4x256xf32>,
    %16 = vector.broadcast %7 : vector<1x1x256xf32> to vector<2x4x256xf32>
    %17 = arith.mulf %3, %16 : vector<2x4x256xf32>
    %c2 = arith.constant 2 : index
    %c0_13 = arith.constant 0 : index
    %c0_14 = arith.constant 0 : index
    %c128_15 = arith.constant 128 : index
    %18 = vector.load %arg7[%c2, %c0_13, %c0_14, %c128_15] : memref<3x2x4x512xf32, #tpu.memory_space<vmem>>, vector<1x2x4x256xf32>
    %19 = vector.shape_cast %18 : vector<1x2x4x256xf32> to vector<2x4x256xf32>
    %20 = vector.shape_cast %17 : vector<2x4x256xf32> to vector<1x2x4x256xf32>
    tpu.vector_store %arg7[%c2, %c0_13, %c0_14, %c128_15], %20 {strides = array<i32>} : memref<3x2x4x512xf32, #tpu.memory_space<vmem>>, vector<1x2x4x256xf32>,
    %c0_16 = arith.constant 0 : index
    %c0_17 = arith.constant 0 : index
    %c0_18 = arith.constant 0 : index
    %c111 = arith.constant 111 : index
    %21 = vector.load %arg7[%c0_16, %c0_17, %c0_18, %c111] : memref<3x2x4x512xf32, #tpu.memory_space<vmem>>, vector<1x2x4x256xf32>
    %22 = vector.shape_cast %21 : vector<1x2x4x256xf32> to vector<2x4x256xf32>
    %c0_19 = arith.constant 0 : index
    %c0_20 = arith.constant 0 : index
    %c0_21 = arith.constant 0 : index
    %23 = vector.load %arg8[%c0_19, %c0_20, %c0_21] : memref<2x36x256xf32, #tpu.memory_space<vmem>>, vector<2x4x256xf32>
    tpu.vector_store %arg8[%c0_19, %c0_20, %c0_21], %22 {strides = array<i32>} : memref<2x36x256xf32, #tpu.memory_space<vmem>>, vector<2x4x256xf32>,
    %c1_22 = arith.constant 1 : index
    %c0_23 = arith.constant 0 : index
    %c0_24 = arith.constant 0 : index
    %c112 = arith.constant 112 : index
    %24 = vector.load %arg7[%c1_22, %c0_23, %c0_24, %c112] : memref<3x2x4x512xf32, #tpu.memory_space<vmem>>, vector<1x2x4x256xf32>
    %25 = vector.shape_cast %24 : vector<1x2x4x256xf32> to vector<2x4x256xf32>
    %c0_25 = arith.constant 0 : index
    %c4 = arith.constant 4 : index
    %c0_26 = arith.constant 0 : index
    %26 = vector.load %arg8[%c0_25, %c4, %c0_26] : memref<2x36x256xf32, #tpu.memory_space<vmem>>, vector<2x4x256xf32>
    tpu.vector_store %arg8[%c0_25, %c4, %c0_26], %25 {strides = array<i32>} : memref<2x36x256xf32, #tpu.memory_space<vmem>>, vector<2x4x256xf32>,
    %c2_27 = arith.constant 2 : index
    %c0_28 = arith.constant 0 : index
    %c0_29 = arith.constant 0 : index
    %c113 = arith.constant 113 : index
    %27 = vector.load %arg7[%c2_27, %c0_28, %c0_29, %c113] : memref<3x2x4x512xf32, #tpu.memory_space<vmem>>, vector<1x2x4x256xf32>
    %28 = vector.shape_cast %27 : vector<1x2x4x256xf32> to vector<2x4x256xf32>
    %c0_30 = arith.constant 0 : index
    %c8 = arith.constant 8 : index
    %c0_31 = arith.constant 0 : index
    %29 = vector.load %arg8[%c0_30, %c8, %c0_31] : memref<2x36x256xf32, #tpu.memory_space<vmem>>, vector<2x4x256xf32>
    tpu.vector_store %arg8[%c0_30, %c8, %c0_31], %28 {strides = array<i32>} : memref<2x36x256xf32, #tpu.memory_space<vmem>>, vector<2x4x256xf32>,
    %c0_32 = arith.constant 0 : index
    %c0_33 = arith.constant 0 : index
    %c0_34 = arith.constant 0 : index
    %c127 = arith.constant 127 : index
    %30 = vector.load %arg7[%c0_32, %c0_33, %c0_34, %c127] : memref<3x2x4x512xf32, #tpu.memory_space<vmem>>, vector<1x2x4x256xf32>
    %31 = vector.shape_cast %30 : vector<1x2x4x256xf32> to vector<2x4x256xf32>
    %c0_35 = arith.constant 0 : index
    %c12 = arith.constant 12 : index
    %c0_36 = arith.constant 0 : index
    %32 = vector.load %arg8[%c0_35, %c12, %c0_36] : memref<2x36x256xf32, #tpu.memory_space<vmem>>, vector<2x4x256xf32>
    tpu.vector_store %arg8[%c0_35, %c12, %c0_36], %31 {strides = array<i32>} : memref<2x36x256xf32, #tpu.memory_space<vmem>>, vector<2x4x256xf32>,
    %c1_37 = arith.constant 1 : index
    %c0_38 = arith.constant 0 : index
    %c0_39 = arith.constant 0 : index
    %c128_40 = arith.constant 128 : index
    %33 = vector.load %arg7[%c1_37, %c0_38, %c0_39, %c128_40] : memref<3x2x4x512xf32, #tpu.memory_space<vmem>>, vector<1x2x4x256xf32>
    %34 = vector.shape_cast %33 : vector<1x2x4x256xf32> to vector<2x4x256xf32>
    %c0_41 = arith.constant 0 : index
    %c16 = arith.constant 16 : index
    %c0_42 = arith.constant 0 : index
    %35 = vector.load %arg8[%c0_41, %c16, %c0_42] : memref<2x36x256xf32, #tpu.memory_space<vmem>>, vector<2x4x256xf32>
    tpu.vector_store %arg8[%c0_41, %c16, %c0_42], %34 {strides = array<i32>} : memref<2x36x256xf32, #tpu.memory_space<vmem>>, vector<2x4x256xf32>,
    %c2_43 = arith.constant 2 : index
    %c0_44 = arith.constant 0 : index
    %c0_45 = arith.constant 0 : index
    %c129 = arith.constant 129 : index
    %36 = vector.load %arg7[%c2_43, %c0_44, %c0_45, %c129] : memref<3x2x4x512xf32, #tpu.memory_space<vmem>>, vector<1x2x4x256xf32>
    %37 = vector.shape_cast %36 : vector<1x2x4x256xf32> to vector<2x4x256xf32>
    %c0_46 = arith.constant 0 : index
    %c20 = arith.constant 20 : index
    %c0_47 = arith.constant 0 : index
    %38 = vector.load %arg8[%c0_46, %c20, %c0_47] : memref<2x36x256xf32, #tpu.memory_space<vmem>>, vector<2x4x256xf32>
    tpu.vector_store %arg8[%c0_46, %c20, %c0_47], %37 {strides = array<i32>} : memref<2x36x256xf32, #tpu.memory_space<vmem>>, vector<2x4x256xf32>,
    %c0_48 = arith.constant 0 : index
    %c0_49 = arith.constant 0 : index
    %c0_50 = arith.constant 0 : index
    %c143 = arith.constant 143 : index
    %39 = vector.load %arg7[%c0_48, %c0_49, %c0_50, %c143] : memref<3x2x4x512xf32, #tpu.memory_space<vmem>>, vector<1x2x4x256xf32>
    %40 = vector.shape_cast %39 : vector<1x2x4x256xf32> to vector<2x4x256xf32>
    %c0_51 = arith.constant 0 : index
    %c24 = arith.constant 24 : index
    %c0_52 = arith.constant 0 : index
    %41 = vector.load %arg8[%c0_51, %c24, %c0_52] : memref<2x36x256xf32, #tpu.memory_space<vmem>>, vector<2x4x256xf32>
    tpu.vector_store %arg8[%c0_51, %c24, %c0_52], %40 {strides = array<i32>} : memref<2x36x256xf32, #tpu.memory_space<vmem>>, vector<2x4x256xf32>,
    %c1_53 = arith.constant 1 : index
    %c0_54 = arith.constant 0 : index
    %c0_55 = arith.constant 0 : index
    %c144 = arith.constant 144 : index
    %42 = vector.load %arg7[%c1_53, %c0_54, %c0_55, %c144] : memref<3x2x4x512xf32, #tpu.memory_space<vmem>>, vector<1x2x4x256xf32>
    %43 = vector.shape_cast %42 : vector<1x2x4x256xf32> to vector<2x4x256xf32>
    %c0_56 = arith.constant 0 : index
    %c28 = arith.constant 28 : index
    %c0_57 = arith.constant 0 : index
    %44 = vector.load %arg8[%c0_56, %c28, %c0_57] : memref<2x36x256xf32, #tpu.memory_space<vmem>>, vector<2x4x256xf32>
    tpu.vector_store %arg8[%c0_56, %c28, %c0_57], %43 {strides = array<i32>} : memref<2x36x256xf32, #tpu.memory_space<vmem>>, vector<2x4x256xf32>,
    %c2_58 = arith.constant 2 : index
    %c0_59 = arith.constant 0 : index
    %c0_60 = arith.constant 0 : index
    %c145 = arith.constant 145 : index
    %45 = vector.load %arg7[%c2_58, %c0_59, %c0_60, %c145] : memref<3x2x4x512xf32, #tpu.memory_space<vmem>>, vector<1x2x4x256xf32>
    %46 = vector.shape_cast %45 : vector<1x2x4x256xf32> to vector<2x4x256xf32>
    %c0_61 = arith.constant 0 : index
    %c32 = arith.constant 32 : index
    %c0_62 = arith.constant 0 : index
    %47 = vector.load %arg8[%c0_61, %c32, %c0_62] : memref<2x36x256xf32, #tpu.memory_space<vmem>>, vector<2x4x256xf32>
    tpu.vector_store %arg8[%c0_61, %c32, %c0_62], %46 {strides = array<i32>} : memref<2x36x256xf32, #tpu.memory_space<vmem>>, vector<2x4x256xf32>,
    %c0_63 = arith.constant 0 : index
    %c0_64 = arith.constant 0 : index
    %48 = vector.load %arg2[%c0_63, %c0_64] : memref<4x36xf32, #tpu.memory_space<vmem>>, vector<4x36xf32>
    %c0_65 = arith.constant 0 : index
    %c0_66 = arith.constant 0 : index
    %c0_67 = arith.constant 0 : index
    %49 = vector.load %arg8[%c0_65, %c0_66, %c0_67] : memref<2x36x256xf32, #tpu.memory_space<vmem>>, vector<1x36x256xf32>
    %50 = vector.shape_cast %49 : vector<1x36x256xf32> to vector<36x256xf32>
    %cst = arith.constant dense<0.000000e+00> : vector<4x256xf32>
    %51 = tpu.matmul %48, %50, %cst {dimension_numbers = #tpu.dot_dimension_numbers<[1], [0], [0], [1], [0, 0, 1, 1], [], []>} : vector<4x36xf32>, vector<36x256xf32>, vector<4x256xf32> -> vector<4x256xf32>
    %c2_i32 = arith.constant 2 : i32
    %52 = arith.muli %arg0, %c2_i32 : i32
    %c0_i32_68 = arith.constant 0 : i32
    %53 = arith.addi %52, %c0_i32_68 : i32
    %54 = arith.index_cast %53 : i32 to index
    %c0_69 = arith.constant 0 : index
    %c0_70 = arith.constant 0 : index
    %55 = vector.load %arg6[%54, %c0_69, %c0_70] : memref<2x4x256xf32, #tpu.memory_space<vmem>>, vector<1x4x256xf32>
    %56 = vector.shape_cast %55 : vector<1x4x256xf32> to vector<4x256xf32>
    %57 = vector.shape_cast %51 : vector<4x256xf32> to vector<1x4x256xf32>
    tpu.vector_store %arg6[%54, %c0_69, %c0_70], %57 {strides = array<i32>} : memref<2x4x256xf32, #tpu.memory_space<vmem>>, vector<1x4x256xf32>,
    %c1_71 = arith.constant 1 : index
    %c0_72 = arith.constant 0 : index
    %c0_73 = arith.constant 0 : index
    %58 = vector.load %arg8[%c1_71, %c0_72, %c0_73] : memref<2x36x256xf32, #tpu.memory_space<vmem>>, vector<1x36x256xf32>
    %59 = vector.shape_cast %58 : vector<1x36x256xf32> to vector<36x256xf32>
    %cst_74 = arith.constant dense<0.000000e+00> : vector<4x256xf32>
    %60 = tpu.matmul %48, %59, %cst_74 {dimension_numbers = #tpu.dot_dimension_numbers<[1], [0], [0], [1], [0, 0, 1, 1], [], []>} : vector<4x36xf32>, vector<36x256xf32>, vector<4x256xf32> -> vector<4x256xf32>
    %c2_i32_75 = arith.constant 2 : i32
    %61 = arith.muli %arg0, %c2_i32_75 : i32
    %c1_i32 = arith.constant 1 : i32
    %62 = arith.addi %61, %c1_i32 : i32
    %63 = arith.index_cast %62 : i32 to index
    %c0_76 = arith.constant 0 : index
    %c0_77 = arith.constant 0 : index
    %64 = vector.load %arg6[%63, %c0_76, %c0_77] : memref<2x4x256xf32, #tpu.memory_space<vmem>>, vector<1x4x256xf32>
    %65 = vector.shape_cast %64 : vector<1x4x256xf32> to vector<4x256xf32>
    %66 = vector.shape_cast %60 : vector<4x256xf32> to vector<1x4x256xf32>
    tpu.vector_store %arg6[%63, %c0_76, %c0_77], %66 {strides = array<i32>} : memref<2x4x256xf32, #tpu.memory_space<vmem>>, vector<1x4x256xf32>,
    %c0_i32_78 = arith.constant 0 : i32
    %67 = arith.cmpi eq, %arg0, %c0_i32_78 : i32
    %68 = arith.extui %67 : i1 to i32
    %c0_i32_79 = arith.constant 0 : i32
    %69 = arith.cmpi ne, %68, %c0_i32_79 : i32
    scf.if %69 {
      %c0_80 = arith.constant 0 : index
      %c0_81 = arith.constant 0 : index
      %c0_82 = arith.constant 0 : index
      %70 = vector.load %arg6[%c0_80, %c0_81, %c0_82] : memref<2x4x256xf32, #tpu.memory_space<vmem>>, vector<2x4x256xf32>
      %cst_83 = arith.constant dense<0.000000e+00> : vector<2x4xf32>
      %71 = vector.multi_reduction <add>, %70, %cst_83 [2] : vector<2x4x256xf32> to vector<2x4xf32>
      %72 = vector.shape_cast %71 : vector<2x4xf32> to vector<2x4x1xf32>
      %cst_84 = arith.constant dense<0.000000e+00> : vector<4x1xf32>
      %73 = vector.multi_reduction <add>, %72, %cst_84 [0] : vector<2x4x1xf32> to vector<4x1xf32>
      %74 = vector.shape_cast %73 : vector<4x1xf32> to vector<1x4x1xf32>
      %cst_85 = arith.constant 0.001953125 : f32
      %75 = vector.broadcast %cst_85 : f32 to vector<1x4x1xf32>
      %76 = arith.mulf %74, %75 : vector<1x4x1xf32>
      %77 = vector.broadcast %76 : vector<1x4x1xf32> to vector<2x4x256xf32>
      %78 = arith.subf %70, %77 : vector<2x4x256xf32>
      %79 = arith.mulf %78, %78 : vector<2x4x256xf32>
      %cst_86 = arith.constant dense<0.000000e+00> : vector<2x4xf32>
      %80 = vector.multi_reduction <add>, %79, %cst_86 [2] : vector<2x4x256xf32> to vector<2x4xf32>
      %81 = vector.shape_cast %80 : vector<2x4xf32> to vector<2x4x1xf32>
      %cst_87 = arith.constant dense<0.000000e+00> : vector<4x1xf32>
      %82 = vector.multi_reduction <add>, %81, %cst_87 [0] : vector<2x4x1xf32> to vector<4x1xf32>
      %83 = vector.shape_cast %82 : vector<4x1xf32> to vector<1x4x1xf32>
      %cst_88 = arith.constant 0.001953125 : f32
      %84 = vector.broadcast %cst_88 : f32 to vector<1x4x1xf32>
      %85 = arith.mulf %83, %84 : vector<1x4x1xf32>
      %c0_89 = arith.constant 0 : index
      %c0_90 = arith.constant 0 : index
      %86 = vector.load %arg4[%c0_89, %c0_90] : memref<4x1xf32, #tpu.memory_space<vmem>>, vector<4x1xf32>
      %87 = vector.shape_cast %86 : vector<4x1xf32> to vector<1x4x1xf32>
      %cst_91 = arith.constant 9.99999974E-6 : f32
      %88 = vector.broadcast %cst_91 : f32 to vector<1x4x1xf32>
      %89 = arith.addf %85, %88 : vector<1x4x1xf32>
      %90 = math.rsqrt %89 : vector<1x4x1xf32>
      %91 = arith.mulf %87, %90 : vector<1x4x1xf32>
      %c0_92 = arith.constant 0 : index
      %c0_93 = arith.constant 0 : index
      %92 = vector.load %arg5[%c0_92, %c0_93] : memref<4x1xf32, #tpu.memory_space<vmem>>, vector<4x1xf32>
      %93 = vector.shape_cast %92 : vector<4x1xf32> to vector<1x4x1xf32>
      %94 = arith.mulf %76, %91 : vector<1x4x1xf32>
      %95 = arith.subf %93, %94 : vector<1x4x1xf32>
      %96 = vector.broadcast %91 : vector<1x4x1xf32> to vector<2x4x256xf32>
      %97 = arith.mulf %70, %96 : vector<2x4x256xf32>
      %98 = vector.broadcast %95 : vector<1x4x1xf32> to vector<2x4x256xf32>
      %99 = arith.addf %97, %98 : vector<2x4x256xf32>
      %cst_94 = arith.constant 0.000000e+00 : f32
      %100 = vector.broadcast %cst_94 : f32 to vector<2x4x256xf32>
      %101 = arith.maximumf %99, %100 : vector<2x4x256xf32>
      %c0_95 = arith.constant 0 : index
      %c0_96 = arith.constant 0 : index
      %c0_97 = arith.constant 0 : index
      %102 = vector.load %arg6[%c0_95, %c0_96, %c0_97] : memref<2x4x256xf32, #tpu.memory_space<vmem>>, vector<2x4x256xf32>
      tpu.vector_store %arg6[%c0_95, %c0_96, %c0_97], %101 {strides = array<i32>} : memref<2x4x256xf32, #tpu.memory_space<vmem>>, vector<2x4x256xf32>,
    } else {
    }
    return
  }
  func.func @transform_0(%arg0: i32) -> (i32, i32, i32) {
    %c0_i32 = arith.constant 0 : i32
    %c0_i32_0 = arith.constant 0 : i32
    %c0_i32_1 = arith.constant 0 : i32
    return %arg0, %c0_i32, %c0_i32_0 : i32, i32, i32
  }
  func.func @transform_1(%arg0: i32) -> (i32, i32) {
    %c0_i32 = arith.constant 0 : i32
    %c0_i32_0 = arith.constant 0 : i32
    %c0_i32_1 = arith.constant 0 : i32
    return %c0_i32, %c0_i32_0 : i32, i32
  }
  func.func @transform_2(%arg0: i32) -> (i32, i32) {
    %c0_i32 = arith.constant 0 : i32
    %c0_i32_0 = arith.constant 0 : i32
    %c0_i32_1 = arith.constant 0 : i32
    return %c0_i32, %c0_i32_0 : i32, i32
  }
  func.func @transform_3(%arg0: i32) -> (i32, i32) {
    %c0_i32 = arith.constant 0 : i32
    %c0_i32_0 = arith.constant 0 : i32
    %c0_i32_1 = arith.constant 0 : i32
    return %c0_i32, %c0_i32_0 : i32, i32
  }
  func.func @transform_4(%arg0: i32) -> (i32, i32) {
    %c0_i32 = arith.constant 0 : i32
    %c0_i32_0 = arith.constant 0 : i32
    %c0_i32_1 = arith.constant 0 : i32
    return %c0_i32, %c0_i32_0 : i32, i32
  }
  func.func @transform_5(%arg0: i32) -> (i32, i32, i32) {
    %c0_i32 = arith.constant 0 : i32
    %c0_i32_0 = arith.constant 0 : i32
    %c0_i32_1 = arith.constant 0 : i32
    %c0_i32_2 = arith.constant 0 : i32
    return %c0_i32, %c0_i32_0, %c0_i32_1 : i32, i32, i32
  }
}

module attributes {stable_mosaic.version = 11 : i64} {
  func.func @kernel(%arg0: i32, %arg1: memref<2x4x256xf32, #tpu.memory_space<vmem>>, %arg2: memref<4x36xf32, #tpu.memory_space<vmem>>, %arg3: memref<2x256xf32, #tpu.memory_space<vmem>>, %arg4: memref<4x1xf32, #tpu.memory_space<vmem>>, %arg5: memref<4x1xf32, #tpu.memory_space<vmem>>, %arg6: memref<2x4x256xf32, #tpu.memory_space<vmem>>, %arg7: memref<2x4x256xf32, #tpu.memory_space<vmem>>, %arg8: memref<3x2x4x512xf32, #tpu.memory_space<vmem>>, %arg9: memref<2x36x256xf32, #tpu.memory_space<vmem>>) attributes {dimension_semantics = [#tpu.dimension_semantics<arbitrary>], iteration_bounds = array<i64: 1>, scalar_prefetch = 0 : i64, scratch_operands = 2 : i64, tpu.core_type = #tpu.core_type<tc>, window_params = [{transform_indices = @transform_0, window_bounds = array<i64: 2, 4, 256>}, {pipeline_mode = #tpu.pipeline_mode<synchronous>, transform_indices = @transform_1, window_bounds = array<i64: 4, 36>}, {pipeline_mode = #tpu.pipeline_mode<synchronous>, transform_indices = @transform_2, window_bounds = array<i64: 2, 256>}, {pipeline_mode = #tpu.pipeline_mode<synchronous>, transform_indices = @transform_3, window_bounds = array<i64: 4, 1>}, {pipeline_mode = #tpu.pipeline_mode<synchronous>, transform_indices = @transform_4, window_bounds = array<i64: 4, 1>}, {pipeline_mode = #tpu.pipeline_mode<synchronous>, transform_indices = @transform_5, window_bounds = array<i64: 2, 4, 256>}, {pipeline_mode = #tpu.pipeline_mode<synchronous>, transform_indices = @transform_6, window_bounds = array<i64: 2, 4, 256>}]} {
    %c0_i32 = arith.constant 0 : i32
    %0 = arith.cmpi eq, %arg0, %c0_i32 : i32
    %1 = arith.extui %0 : i1 to i32
    %c0_i32_0 = arith.constant 0 : i32
    %2 = arith.cmpi ne, %1, %c0_i32_0 : i32
    scf.if %2 {
      %cst_80 = arith.constant 0.000000e+00 : f32
      %70 = vector.broadcast %cst_80 : f32 to vector<3x2x4x512xf32>
      %c0_81 = arith.constant 0 : index
      %c0_82 = arith.constant 0 : index
      %c0_83 = arith.constant 0 : index
      %c0_84 = arith.constant 0 : index
      %71 = vector.load %arg8[%c0_81, %c0_82, %c0_83, %c0_84] : memref<3x2x4x512xf32, #tpu.memory_space<vmem>>, vector<3x2x4x512xf32>
      tpu.vector_store %arg8[%c0_81, %c0_82, %c0_83, %c0_84], %70 {strides = array<i32>} : memref<3x2x4x512xf32, #tpu.memory_space<vmem>>, vector<3x2x4x512xf32>,
    } else {
    }
    %c0 = arith.constant 0 : index
    %c0_1 = arith.constant 0 : index
    %c0_2 = arith.constant 0 : index
    %3 = vector.load %arg1[%c0, %c0_1, %c0_2] : memref<2x4x256xf32, #tpu.memory_space<vmem>>, vector<2x4x256xf32>
    %c0_3 = arith.constant 0 : index
    %c0_4 = arith.constant 0 : index
    %4 = vector.load %arg3[%c0_3, %c0_4] : memref<2x256xf32, #tpu.memory_space<vmem>>, vector<1x256xf32>
    %5 = vector.shape_cast %4 : vector<1x256xf32> to vector<1x1x256xf32>
    %c1 = arith.constant 1 : index
    %c0_5 = arith.constant 0 : index
    %6 = vector.load %arg3[%c1, %c0_5] : memref<2x256xf32, #tpu.memory_space<vmem>>, vector<1x256xf32>
    %7 = vector.shape_cast %6 : vector<1x256xf32> to vector<1x1x256xf32>
    %8 = vector.broadcast %5 : vector<1x1x256xf32> to vector<2x4x256xf32>
    %9 = arith.mulf %3, %8 : vector<2x4x256xf32>
    %c0_6 = arith.constant 0 : index
    %c0_7 = arith.constant 0 : index
    %c0_8 = arith.constant 0 : index
    %c128 = arith.constant 128 : index
    %10 = vector.load %arg8[%c0_6, %c0_7, %c0_8, %c128] : memref<3x2x4x512xf32, #tpu.memory_space<vmem>>, vector<1x2x4x256xf32>
    %11 = vector.shape_cast %10 : vector<1x2x4x256xf32> to vector<2x4x256xf32>
    %12 = vector.shape_cast %9 : vector<2x4x256xf32> to vector<1x2x4x256xf32>
    tpu.vector_store %arg8[%c0_6, %c0_7, %c0_8, %c128], %12 {strides = array<i32>} : memref<3x2x4x512xf32, #tpu.memory_space<vmem>>, vector<1x2x4x256xf32>,
    %c1_9 = arith.constant 1 : index
    %c0_10 = arith.constant 0 : index
    %c0_11 = arith.constant 0 : index
    %c128_12 = arith.constant 128 : index
    %13 = vector.load %arg8[%c1_9, %c0_10, %c0_11, %c128_12] : memref<3x2x4x512xf32, #tpu.memory_space<vmem>>, vector<1x2x4x256xf32>
    %14 = vector.shape_cast %13 : vector<1x2x4x256xf32> to vector<2x4x256xf32>
    %15 = vector.shape_cast %3 : vector<2x4x256xf32> to vector<1x2x4x256xf32>
    tpu.vector_store %arg8[%c1_9, %c0_10, %c0_11, %c128_12], %15 {strides = array<i32>} : memref<3x2x4x512xf32, #tpu.memory_space<vmem>>, vector<1x2x4x256xf32>,
    %16 = vector.broadcast %7 : vector<1x1x256xf32> to vector<2x4x256xf32>
    %17 = arith.mulf %3, %16 : vector<2x4x256xf32>
    %c2 = arith.constant 2 : index
    %c0_13 = arith.constant 0 : index
    %c0_14 = arith.constant 0 : index
    %c128_15 = arith.constant 128 : index
    %18 = vector.load %arg8[%c2, %c0_13, %c0_14, %c128_15] : memref<3x2x4x512xf32, #tpu.memory_space<vmem>>, vector<1x2x4x256xf32>
    %19 = vector.shape_cast %18 : vector<1x2x4x256xf32> to vector<2x4x256xf32>
    %20 = vector.shape_cast %17 : vector<2x4x256xf32> to vector<1x2x4x256xf32>
    tpu.vector_store %arg8[%c2, %c0_13, %c0_14, %c128_15], %20 {strides = array<i32>} : memref<3x2x4x512xf32, #tpu.memory_space<vmem>>, vector<1x2x4x256xf32>,
    %c0_16 = arith.constant 0 : index
    %c0_17 = arith.constant 0 : index
    %c0_18 = arith.constant 0 : index
    %c111 = arith.constant 111 : index
    %21 = vector.load %arg8[%c0_16, %c0_17, %c0_18, %c111] : memref<3x2x4x512xf32, #tpu.memory_space<vmem>>, vector<1x2x4x256xf32>
    %22 = vector.shape_cast %21 : vector<1x2x4x256xf32> to vector<2x4x256xf32>
    %c0_19 = arith.constant 0 : index
    %c0_20 = arith.constant 0 : index
    %c0_21 = arith.constant 0 : index
    %23 = vector.load %arg9[%c0_19, %c0_20, %c0_21] : memref<2x36x256xf32, #tpu.memory_space<vmem>>, vector<2x4x256xf32>
    tpu.vector_store %arg9[%c0_19, %c0_20, %c0_21], %22 {strides = array<i32>} : memref<2x36x256xf32, #tpu.memory_space<vmem>>, vector<2x4x256xf32>,
    %c1_22 = arith.constant 1 : index
    %c0_23 = arith.constant 0 : index
    %c0_24 = arith.constant 0 : index
    %c112 = arith.constant 112 : index
    %24 = vector.load %arg8[%c1_22, %c0_23, %c0_24, %c112] : memref<3x2x4x512xf32, #tpu.memory_space<vmem>>, vector<1x2x4x256xf32>
    %25 = vector.shape_cast %24 : vector<1x2x4x256xf32> to vector<2x4x256xf32>
    %c0_25 = arith.constant 0 : index
    %c4 = arith.constant 4 : index
    %c0_26 = arith.constant 0 : index
    %26 = vector.load %arg9[%c0_25, %c4, %c0_26] : memref<2x36x256xf32, #tpu.memory_space<vmem>>, vector<2x4x256xf32>
    tpu.vector_store %arg9[%c0_25, %c4, %c0_26], %25 {strides = array<i32>} : memref<2x36x256xf32, #tpu.memory_space<vmem>>, vector<2x4x256xf32>,
    %c2_27 = arith.constant 2 : index
    %c0_28 = arith.constant 0 : index
    %c0_29 = arith.constant 0 : index
    %c113 = arith.constant 113 : index
    %27 = vector.load %arg8[%c2_27, %c0_28, %c0_29, %c113] : memref<3x2x4x512xf32, #tpu.memory_space<vmem>>, vector<1x2x4x256xf32>
    %28 = vector.shape_cast %27 : vector<1x2x4x256xf32> to vector<2x4x256xf32>
    %c0_30 = arith.constant 0 : index
    %c8 = arith.constant 8 : index
    %c0_31 = arith.constant 0 : index
    %29 = vector.load %arg9[%c0_30, %c8, %c0_31] : memref<2x36x256xf32, #tpu.memory_space<vmem>>, vector<2x4x256xf32>
    tpu.vector_store %arg9[%c0_30, %c8, %c0_31], %28 {strides = array<i32>} : memref<2x36x256xf32, #tpu.memory_space<vmem>>, vector<2x4x256xf32>,
    %c0_32 = arith.constant 0 : index
    %c0_33 = arith.constant 0 : index
    %c0_34 = arith.constant 0 : index
    %c127 = arith.constant 127 : index
    %30 = vector.load %arg8[%c0_32, %c0_33, %c0_34, %c127] : memref<3x2x4x512xf32, #tpu.memory_space<vmem>>, vector<1x2x4x256xf32>
    %31 = vector.shape_cast %30 : vector<1x2x4x256xf32> to vector<2x4x256xf32>
    %c0_35 = arith.constant 0 : index
    %c12 = arith.constant 12 : index
    %c0_36 = arith.constant 0 : index
    %32 = vector.load %arg9[%c0_35, %c12, %c0_36] : memref<2x36x256xf32, #tpu.memory_space<vmem>>, vector<2x4x256xf32>
    tpu.vector_store %arg9[%c0_35, %c12, %c0_36], %31 {strides = array<i32>} : memref<2x36x256xf32, #tpu.memory_space<vmem>>, vector<2x4x256xf32>,
    %c1_37 = arith.constant 1 : index
    %c0_38 = arith.constant 0 : index
    %c0_39 = arith.constant 0 : index
    %c128_40 = arith.constant 128 : index
    %33 = vector.load %arg8[%c1_37, %c0_38, %c0_39, %c128_40] : memref<3x2x4x512xf32, #tpu.memory_space<vmem>>, vector<1x2x4x256xf32>
    %34 = vector.shape_cast %33 : vector<1x2x4x256xf32> to vector<2x4x256xf32>
    %c0_41 = arith.constant 0 : index
    %c16 = arith.constant 16 : index
    %c0_42 = arith.constant 0 : index
    %35 = vector.load %arg9[%c0_41, %c16, %c0_42] : memref<2x36x256xf32, #tpu.memory_space<vmem>>, vector<2x4x256xf32>
    tpu.vector_store %arg9[%c0_41, %c16, %c0_42], %34 {strides = array<i32>} : memref<2x36x256xf32, #tpu.memory_space<vmem>>, vector<2x4x256xf32>,
    %c2_43 = arith.constant 2 : index
    %c0_44 = arith.constant 0 : index
    %c0_45 = arith.constant 0 : index
    %c129 = arith.constant 129 : index
    %36 = vector.load %arg8[%c2_43, %c0_44, %c0_45, %c129] : memref<3x2x4x512xf32, #tpu.memory_space<vmem>>, vector<1x2x4x256xf32>
    %37 = vector.shape_cast %36 : vector<1x2x4x256xf32> to vector<2x4x256xf32>
    %c0_46 = arith.constant 0 : index
    %c20 = arith.constant 20 : index
    %c0_47 = arith.constant 0 : index
    %38 = vector.load %arg9[%c0_46, %c20, %c0_47] : memref<2x36x256xf32, #tpu.memory_space<vmem>>, vector<2x4x256xf32>
    tpu.vector_store %arg9[%c0_46, %c20, %c0_47], %37 {strides = array<i32>} : memref<2x36x256xf32, #tpu.memory_space<vmem>>, vector<2x4x256xf32>,
    %c0_48 = arith.constant 0 : index
    %c0_49 = arith.constant 0 : index
    %c0_50 = arith.constant 0 : index
    %c143 = arith.constant 143 : index
    %39 = vector.load %arg8[%c0_48, %c0_49, %c0_50, %c143] : memref<3x2x4x512xf32, #tpu.memory_space<vmem>>, vector<1x2x4x256xf32>
    %40 = vector.shape_cast %39 : vector<1x2x4x256xf32> to vector<2x4x256xf32>
    %c0_51 = arith.constant 0 : index
    %c24 = arith.constant 24 : index
    %c0_52 = arith.constant 0 : index
    %41 = vector.load %arg9[%c0_51, %c24, %c0_52] : memref<2x36x256xf32, #tpu.memory_space<vmem>>, vector<2x4x256xf32>
    tpu.vector_store %arg9[%c0_51, %c24, %c0_52], %40 {strides = array<i32>} : memref<2x36x256xf32, #tpu.memory_space<vmem>>, vector<2x4x256xf32>,
    %c1_53 = arith.constant 1 : index
    %c0_54 = arith.constant 0 : index
    %c0_55 = arith.constant 0 : index
    %c144 = arith.constant 144 : index
    %42 = vector.load %arg8[%c1_53, %c0_54, %c0_55, %c144] : memref<3x2x4x512xf32, #tpu.memory_space<vmem>>, vector<1x2x4x256xf32>
    %43 = vector.shape_cast %42 : vector<1x2x4x256xf32> to vector<2x4x256xf32>
    %c0_56 = arith.constant 0 : index
    %c28 = arith.constant 28 : index
    %c0_57 = arith.constant 0 : index
    %44 = vector.load %arg9[%c0_56, %c28, %c0_57] : memref<2x36x256xf32, #tpu.memory_space<vmem>>, vector<2x4x256xf32>
    tpu.vector_store %arg9[%c0_56, %c28, %c0_57], %43 {strides = array<i32>} : memref<2x36x256xf32, #tpu.memory_space<vmem>>, vector<2x4x256xf32>,
    %c2_58 = arith.constant 2 : index
    %c0_59 = arith.constant 0 : index
    %c0_60 = arith.constant 0 : index
    %c145 = arith.constant 145 : index
    %45 = vector.load %arg8[%c2_58, %c0_59, %c0_60, %c145] : memref<3x2x4x512xf32, #tpu.memory_space<vmem>>, vector<1x2x4x256xf32>
    %46 = vector.shape_cast %45 : vector<1x2x4x256xf32> to vector<2x4x256xf32>
    %c0_61 = arith.constant 0 : index
    %c32 = arith.constant 32 : index
    %c0_62 = arith.constant 0 : index
    %47 = vector.load %arg9[%c0_61, %c32, %c0_62] : memref<2x36x256xf32, #tpu.memory_space<vmem>>, vector<2x4x256xf32>
    tpu.vector_store %arg9[%c0_61, %c32, %c0_62], %46 {strides = array<i32>} : memref<2x36x256xf32, #tpu.memory_space<vmem>>, vector<2x4x256xf32>,
    %c0_63 = arith.constant 0 : index
    %c0_64 = arith.constant 0 : index
    %48 = vector.load %arg2[%c0_63, %c0_64] : memref<4x36xf32, #tpu.memory_space<vmem>>, vector<4x36xf32>
    %c0_65 = arith.constant 0 : index
    %c0_66 = arith.constant 0 : index
    %c0_67 = arith.constant 0 : index
    %49 = vector.load %arg9[%c0_65, %c0_66, %c0_67] : memref<2x36x256xf32, #tpu.memory_space<vmem>>, vector<1x36x256xf32>
    %50 = vector.shape_cast %49 : vector<1x36x256xf32> to vector<36x256xf32>
    %cst = arith.constant dense<0.000000e+00> : vector<4x256xf32>
    %51 = tpu.matmul %48, %50, %cst {dimension_numbers = #tpu.dot_dimension_numbers<[1], [0], [0], [1], [0, 0, 1, 1], [], []>} : vector<4x36xf32>, vector<36x256xf32>, vector<4x256xf32> -> vector<4x256xf32>
    %c2_i32 = arith.constant 2 : i32
    %52 = arith.muli %arg0, %c2_i32 : i32
    %c0_i32_68 = arith.constant 0 : i32
    %53 = arith.addi %52, %c0_i32_68 : i32
    %54 = arith.index_cast %53 : i32 to index
    %c0_69 = arith.constant 0 : index
    %c0_70 = arith.constant 0 : index
    %55 = vector.load %arg7[%54, %c0_69, %c0_70] : memref<2x4x256xf32, #tpu.memory_space<vmem>>, vector<1x4x256xf32>
    %56 = vector.shape_cast %55 : vector<1x4x256xf32> to vector<4x256xf32>
    %57 = vector.shape_cast %51 : vector<4x256xf32> to vector<1x4x256xf32>
    tpu.vector_store %arg7[%54, %c0_69, %c0_70], %57 {strides = array<i32>} : memref<2x4x256xf32, #tpu.memory_space<vmem>>, vector<1x4x256xf32>,
    %c1_71 = arith.constant 1 : index
    %c0_72 = arith.constant 0 : index
    %c0_73 = arith.constant 0 : index
    %58 = vector.load %arg9[%c1_71, %c0_72, %c0_73] : memref<2x36x256xf32, #tpu.memory_space<vmem>>, vector<1x36x256xf32>
    %59 = vector.shape_cast %58 : vector<1x36x256xf32> to vector<36x256xf32>
    %cst_74 = arith.constant dense<0.000000e+00> : vector<4x256xf32>
    %60 = tpu.matmul %48, %59, %cst_74 {dimension_numbers = #tpu.dot_dimension_numbers<[1], [0], [0], [1], [0, 0, 1, 1], [], []>} : vector<4x36xf32>, vector<36x256xf32>, vector<4x256xf32> -> vector<4x256xf32>
    %c2_i32_75 = arith.constant 2 : i32
    %61 = arith.muli %arg0, %c2_i32_75 : i32
    %c1_i32 = arith.constant 1 : i32
    %62 = arith.addi %61, %c1_i32 : i32
    %63 = arith.index_cast %62 : i32 to index
    %c0_76 = arith.constant 0 : index
    %c0_77 = arith.constant 0 : index
    %64 = vector.load %arg7[%63, %c0_76, %c0_77] : memref<2x4x256xf32, #tpu.memory_space<vmem>>, vector<1x4x256xf32>
    %65 = vector.shape_cast %64 : vector<1x4x256xf32> to vector<4x256xf32>
    %66 = vector.shape_cast %60 : vector<4x256xf32> to vector<1x4x256xf32>
    tpu.vector_store %arg7[%63, %c0_76, %c0_77], %66 {strides = array<i32>} : memref<2x4x256xf32, #tpu.memory_space<vmem>>, vector<1x4x256xf32>,
    %c0_i32_78 = arith.constant 0 : i32
    %67 = arith.cmpi eq, %arg0, %c0_i32_78 : i32
    %68 = arith.extui %67 : i1 to i32
    %c0_i32_79 = arith.constant 0 : i32
    %69 = arith.cmpi ne, %68, %c0_i32_79 : i32
    scf.if %69 {
      %c0_80 = arith.constant 0 : index
      %c0_81 = arith.constant 0 : index
      %c0_82 = arith.constant 0 : index
      %70 = vector.load %arg7[%c0_80, %c0_81, %c0_82] : memref<2x4x256xf32, #tpu.memory_space<vmem>>, vector<2x4x256xf32>
      %cst_83 = arith.constant dense<0.000000e+00> : vector<2x4xf32>
      %71 = vector.multi_reduction <add>, %70, %cst_83 [2] : vector<2x4x256xf32> to vector<2x4xf32>
      %72 = vector.shape_cast %71 : vector<2x4xf32> to vector<2x4x1xf32>
      %cst_84 = arith.constant dense<0.000000e+00> : vector<4x1xf32>
      %73 = vector.multi_reduction <add>, %72, %cst_84 [0] : vector<2x4x1xf32> to vector<4x1xf32>
      %74 = vector.shape_cast %73 : vector<4x1xf32> to vector<1x4x1xf32>
      %cst_85 = arith.constant 0.001953125 : f32
      %75 = vector.broadcast %cst_85 : f32 to vector<1x4x1xf32>
      %76 = arith.mulf %74, %75 : vector<1x4x1xf32>
      %77 = vector.broadcast %76 : vector<1x4x1xf32> to vector<2x4x256xf32>
      %78 = arith.subf %70, %77 : vector<2x4x256xf32>
      %79 = arith.mulf %78, %78 : vector<2x4x256xf32>
      %cst_86 = arith.constant dense<0.000000e+00> : vector<2x4xf32>
      %80 = vector.multi_reduction <add>, %79, %cst_86 [2] : vector<2x4x256xf32> to vector<2x4xf32>
      %81 = vector.shape_cast %80 : vector<2x4xf32> to vector<2x4x1xf32>
      %cst_87 = arith.constant dense<0.000000e+00> : vector<4x1xf32>
      %82 = vector.multi_reduction <add>, %81, %cst_87 [0] : vector<2x4x1xf32> to vector<4x1xf32>
      %83 = vector.shape_cast %82 : vector<4x1xf32> to vector<1x4x1xf32>
      %cst_88 = arith.constant 0.001953125 : f32
      %84 = vector.broadcast %cst_88 : f32 to vector<1x4x1xf32>
      %85 = arith.mulf %83, %84 : vector<1x4x1xf32>
      %c0_89 = arith.constant 0 : index
      %c0_90 = arith.constant 0 : index
      %86 = vector.load %arg4[%c0_89, %c0_90] : memref<4x1xf32, #tpu.memory_space<vmem>>, vector<4x1xf32>
      %87 = vector.shape_cast %86 : vector<4x1xf32> to vector<1x4x1xf32>
      %cst_91 = arith.constant 9.99999974E-6 : f32
      %88 = vector.broadcast %cst_91 : f32 to vector<1x4x1xf32>
      %89 = arith.addf %85, %88 : vector<1x4x1xf32>
      %90 = math.rsqrt %89 : vector<1x4x1xf32>
      %91 = arith.mulf %87, %90 : vector<1x4x1xf32>
      %c0_92 = arith.constant 0 : index
      %c0_93 = arith.constant 0 : index
      %92 = vector.load %arg5[%c0_92, %c0_93] : memref<4x1xf32, #tpu.memory_space<vmem>>, vector<4x1xf32>
      %93 = vector.shape_cast %92 : vector<4x1xf32> to vector<1x4x1xf32>
      %94 = arith.mulf %76, %91 : vector<1x4x1xf32>
      %95 = arith.subf %93, %94 : vector<1x4x1xf32>
      %96 = vector.broadcast %91 : vector<1x4x1xf32> to vector<2x4x256xf32>
      %97 = arith.mulf %70, %96 : vector<2x4x256xf32>
      %98 = vector.broadcast %95 : vector<1x4x1xf32> to vector<2x4x256xf32>
      %99 = arith.addf %97, %98 : vector<2x4x256xf32>
      %c0_94 = arith.constant 0 : index
      %c0_95 = arith.constant 0 : index
      %c0_96 = arith.constant 0 : index
      %100 = vector.load %arg6[%c0_94, %c0_95, %c0_96] : memref<2x4x256xf32, #tpu.memory_space<vmem>>, vector<2x4x256xf32>
      %101 = arith.addf %99, %100 : vector<2x4x256xf32>
      %cst_97 = arith.constant 0.000000e+00 : f32
      %102 = vector.broadcast %cst_97 : f32 to vector<2x4x256xf32>
      %103 = arith.maximumf %101, %102 : vector<2x4x256xf32>
      %c0_98 = arith.constant 0 : index
      %c0_99 = arith.constant 0 : index
      %c0_100 = arith.constant 0 : index
      %104 = vector.load %arg7[%c0_98, %c0_99, %c0_100] : memref<2x4x256xf32, #tpu.memory_space<vmem>>, vector<2x4x256xf32>
      tpu.vector_store %arg7[%c0_98, %c0_99, %c0_100], %103 {strides = array<i32>} : memref<2x4x256xf32, #tpu.memory_space<vmem>>, vector<2x4x256xf32>,
    } else {
    }
    return
  }
  func.func @transform_0(%arg0: i32) -> (i32, i32, i32) {
    %c0_i32 = arith.constant 0 : i32
    %c0_i32_0 = arith.constant 0 : i32
    %c0_i32_1 = arith.constant 0 : i32
    return %arg0, %c0_i32, %c0_i32_0 : i32, i32, i32
  }
  func.func @transform_1(%arg0: i32) -> (i32, i32) {
    %c0_i32 = arith.constant 0 : i32
    %c0_i32_0 = arith.constant 0 : i32
    %c0_i32_1 = arith.constant 0 : i32
    return %c0_i32, %c0_i32_0 : i32, i32
  }
  func.func @transform_2(%arg0: i32) -> (i32, i32) {
    %c0_i32 = arith.constant 0 : i32
    %c0_i32_0 = arith.constant 0 : i32
    %c0_i32_1 = arith.constant 0 : i32
    return %c0_i32, %c0_i32_0 : i32, i32
  }
  func.func @transform_3(%arg0: i32) -> (i32, i32) {
    %c0_i32 = arith.constant 0 : i32
    %c0_i32_0 = arith.constant 0 : i32
    %c0_i32_1 = arith.constant 0 : i32
    return %c0_i32, %c0_i32_0 : i32, i32
  }
  func.func @transform_4(%arg0: i32) -> (i32, i32) {
    %c0_i32 = arith.constant 0 : i32
    %c0_i32_0 = arith.constant 0 : i32
    %c0_i32_1 = arith.constant 0 : i32
    return %c0_i32, %c0_i32_0 : i32, i32
  }
  func.func @transform_5(%arg0: i32) -> (i32, i32, i32) {
    %c0_i32 = arith.constant 0 : i32
    %c0_i32_0 = arith.constant 0 : i32
    %c0_i32_1 = arith.constant 0 : i32
    %c0_i32_2 = arith.constant 0 : i32
    return %c0_i32, %c0_i32_0, %c0_i32_1 : i32, i32, i32
  }
  func.func @transform_6(%arg0: i32) -> (i32, i32, i32) {
    %c0_i32 = arith.constant 0 : i32
    %c0_i32_0 = arith.constant 0 : i32
    %c0_i32_1 = arith.constant 0 : i32
    %c0_i32_2 = arith.constant 0 : i32
    return %c0_i32, %c0_i32_0, %c0_i32_1 : i32, i32, i32
  }
}

</mosaic_0001>

<llo_original>
// kernel: residual_block.3
$region0: #{residual_block.3}
  #allocation0 [shape = 'u32[]', space=smem, size = 0x4, offset = 0x4, fixed_abs, tag = 'smem constant byte address 0x4 - core index']
  #allocation1 [shape = 'u32[144,128]{1,0:T(1,128)}', space=vmem, size = 0x12000, scoped, tag = 'internal scratch']
  #allocation2 [shape = 'f32[3,2,4,512]{3,2,1,0:T(4,128)}', space=vmem, size = 0xc000, scoped, tag = 'scratch operand']
  #allocation3 [shape = 'f32[2,36,256]{2,1,0:T(8,128)}', space=vmem, size = 0x14000, scoped, tag = 'scratch operand']
  %s0 = inlined_call_operand.vmem [shape: f32[2,4,256], index: 0, kind: input, shape index: {}]
  %s1 = inlined_call_operand.vmem [shape: f32[4,36], index: 1, kind: input, shape index: {}]
  %s2 = inlined_call_operand.vmem [shape: f32[2,256], index: 2, kind: input, shape index: {}]
  %s3 = inlined_call_operand.vmem [shape: f32[4,1], index: 3, kind: input, shape index: {}]
  %s4 = inlined_call_operand.vmem [shape: f32[4,1], index: 4, kind: input, shape index: {}]
  %s5 = inlined_call_operand.vmem [shape: f32[2,4,256], index: 5, kind: input, shape index: {}]
  %s6 = inlined_call_operand.vmem [shape: f32[2,4,256], index: 6, kind: output, shape index: {}]
  %s7 = sld [smem:[#allocation0]]
  $region42: #{residual_block.3} parent=0
    _
  %s9 = ssub.s32 1, %s7
  %s10 = scalar_select 0, %s9, %s7
  // Predicated region
  $region2: #{residual_block.3} parent=0 // pred_check
    _
  $region3: #{residual_block.3} parent=0 // pred_check_branch
    %12 = sbr.rel (0) target = $region5
  $region4: #{residual_block.3} parent=0 // pred_region
    _
  $region5: #{residual_block.3} parent=0 // pred_fallthru
    _
  // Predicated region
  $region6: #{residual_block.3} parent=0 // pred_check
    _
  $region7: #{residual_block.3} parent=0 // pred_check_branch
    %14 = sbr.rel (0) target = $region9
  $region8: #{residual_block.3} parent=0 // pred_region
    _
  $region9: #{residual_block.3} parent=0 // pred_fallthru
    _
  // Predicated region
  $region10: #{residual_block.3} parent=0 // pred_check
    _
  $region11: #{residual_block.3} parent=0 // pred_check_branch
    %16 = sbr.rel (0) target = $region13
  $region12: #{residual_block.3} parent=0 // pred_region
    _
  $region13: #{residual_block.3} parent=0 // pred_fallthru
    _
  // Predicated region
  $region14: #{residual_block.3} parent=0 // pred_check
    _
  $region15: #{residual_block.3} parent=0 // pred_check_branch
    %18 = sbr.rel (0) target = $region17
  $region16: #{residual_block.3} parent=0 // pred_region
    _
  $region17: #{residual_block.3} parent=0 // pred_fallthru
    _
  // Predicated region
  $region18: #{residual_block.3} parent=0 // pred_check
    _
  $region19: #{residual_block.3} parent=0 // pred_check_branch
    %20 = sbr.rel (0) target = $region21
  $region20: #{residual_block.3} parent=0 // pred_region
    _
  $region21: #{residual_block.3} parent=0 // pred_fallthru
    _
  // Predicated region
  $region22: #{residual_block.3} parent=0 // pred_check
    _
  $region23: #{residual_block.3} parent=0 // pred_check_branch
    %22 = sbr.rel (0) target = $region25
  $region24: #{residual_block.3} parent=0 // pred_region
    _
  $region25: #{residual_block.3} parent=0 // pred_fallthru
    _
  %p23 = scmp.eq.s32.totalorder 0, 0
  // Predicated region
  $region26: #{residual_block.3} parent=0 // pred_check
    %p24 = pneg %p23
  $region27: #{residual_block.3} parent=0 // pred_check_branch
    %26 = sbr.rel (%p24) target = $region29
  $region28: #{residual_block.3} parent=0 // pred_region
    %27 = vst [vmem:[#allocation2] sm:$0xff] 0.0
    %28 = vst [vmem:[#allocation2 + $0x8] sm:$0xff] 0.0
    %29 = vst [vmem:[#allocation2 + $0x10] sm:$0xff] 0.0
    %30 = vst [vmem:[#allocation2 + $0x18] sm:$0xff] 0.0
    %31 = vst [vmem:[#allocation2 + $0x20] sm:$0xff] 0.0
    %32 = vst [vmem:[#allocation2 + $0x28] sm:$0xff] 0.0
    %33 = vst [vmem:[#allocation2 + $0x30] sm:$0xff] 0.0
    %34 = vst [vmem:[#allocation2 + $0x38] sm:$0xff] 0.0
    %35 = vst [vmem:[#allocation2 + $0x40] sm:$0xff] 0.0
    %36 = vst [vmem:[#allocation2 + $0x48] sm:$0xff] 0.0
    %37 = vst [vmem:[#allocation2 + $0x50] sm:$0xff] 0.0
    %38 = vst [vmem:[#allocation2 + $0x58] sm:$0xff] 0.0
  $region29: #{residual_block.3} parent=0 // pred_fallthru
    _
  %v39 = vld [vmem:[%s0] sm:$0xff]
  %v40 = vld [vmem:[%s0 + $0x8] sm:$0xff]
  %v41 = vld [vmem:[%s2] ss:$2 sm:$0x3]
  %s42 = scalar_lea.vmem %s2, 1
  %v43 = vld [vmem:[%s42] ss:$2 sm:$0x3]
  %v45 = vlaneseq
  %v46 = vshrl.u32 %v45, 7
  %v47 = vsub.s32 0, %v46
  %v48 = vrot.slane %v41, %v47
  %v49 = vlaneseq
  %v50 = vshrl.u32 %v49, 7
  %v51 = vsub.s32 1, %v50
  %v52 = vrot.slane %v41, %v51
  %v53 = vcombine.low %v48, %v52
  %v55 = vmul.f32 %v39, %v53
  %v56 = vmul.f32 %v40, %v53
  %57 = vst [vmem:[#allocation2 + $0x4] sm:$0xff] %v55
  %58 = vst [vmem:[#allocation2 + $0x14] sm:$0xff] %v56
  %s59 = scalar_lea.vmem [#allocation2], 32
  %60 = vst [vmem:[%s59 + $0x4] sm:$0xff] %v39
  %61 = vst [vmem:[%s59 + $0x14] sm:$0xff] %v40
  %v63 = vlaneseq
  %v64 = vshrl.u32 %v63, 7
  %v65 = vsub.s32 0, %v64
  %v66 = vrot.slane %v43, %v65
  %v67 = vlaneseq
  %v68 = vshrl.u32 %v67, 7
  %v69 = vsub.s32 1, %v68
  %v70 = vrot.slane %v43, %v69
  %v71 = vcombine.low %v66, %v70
  %v73 = vmul.f32 %v39, %v71
  %v74 = vmul.f32 %v40, %v71
  %s75 = scalar_lea.vmem [#allocation2], 64
  %76 = vst [vmem:[%s75 + $0x4] sm:$0xff] %v73
  %77 = vst [vmem:[%s75 + $0x14] sm:$0xff] %v74
  %v78 = vld [vmem:[#allocation2] sm:$0xff]
  %v79 = vld [vmem:[#allocation2 + $0x8] sm:$0xf]
  %v80 = vld [vmem:[#allocation2 + $0x10] sm:$0xff]
  %v81 = vld [vmem:[#allocation2 + $0x18] sm:$0xf]
  %v86 = vcombine.high %v78, %v78
  %v87 = vcombine.high %v80, %v80
  %88 = vrot.lane.b32.xlu0 %v78, 17
  %v89 = vpop.permute.xlu0 %88
  %90 = vrot.lane.b32.xlu0 %v86, 17
  %v91 = vpop.permute.xlu0 %90
  %92 = vrot.lane.b32.xlu0 %v79, 17
  %v93 = vpop.permute.xlu0 %92
  %94 = vrot.lane.b32.xlu0 %v80, 17
  %v95 = vpop.permute.xlu0 %94
  %96 = vrot.lane.b32.xlu0 %v87, 17
  %v97 = vpop.permute.xlu0 %96
  %98 = vrot.lane.b32.xlu0 %v81, 17
  %v99 = vpop.permute.xlu0 %98
  %vm100 = vcmask 138240
  %v101 = vsel %vm100, %v89, %v91
  %v102 = vsel %vm100, %v91, %v93
  %v103 = vsel %vm100, %v95, %v97
  %v104 = vsel %vm100, %v97, %v99
  %109 = vst [vmem:[#allocation3] sm:$0xf] %v101
  %110 = vst [vmem:[#allocation3 + $0x8] sm:$0xf] %v102
  %111 = vst [vmem:[#allocation3 + $0x50] sm:$0xf] %v103
  %112 = vst [vmem:[#allocation3 + $0x58] sm:$0xf] %v104
  %v113 = vld [vmem:[%s59] sm:$0xff]
  %v114 = vld [vmem:[%s59 + $0x8] sm:$0xf]
  %v115 = vld [vmem:[%s59 + $0x10] sm:$0xff]
  %v116 = vld [vmem:[%s59 + $0x18] sm:$0xf]
  %v121 = vcombine.low %v113, %v113
  %v122 = vcombine.low %v114, %v114
  %v123 = vcombine.low %v115, %v115
  %v124 = vcombine.low %v116, %v116
  %125 = vrot.lane.b32.xlu0 %v121, 16
  %v126 = vpop.permute.xlu0 %125
  %127 = vrot.lane.b32.xlu0 %v113, 16
  %v128 = vpop.permute.xlu0 %127
  %129 = vrot.lane.b32.xlu0 %v122, 16
  %v130 = vpop.permute.xlu0 %129
  %131 = vrot.lane.b32.xlu0 %v123, 16
  %v132 = vpop.permute.xlu0 %131
  %133 = vrot.lane.b32.xlu0 %v115, 16
  %v134 = vpop.permute.xlu0 %133
  %135 = vrot.lane.b32.xlu0 %v124, 16
  %v136 = vpop.permute.xlu0 %135
  %vm137 = vcmask 130048
  %v138 = vsel %vm137, %v126, %v128
  %v139 = vsel %vm137, %v128, %v130
  %v140 = vsel %vm137, %v132, %v134
  %v141 = vsel %vm137, %v134, %v136
  %146 = vst [vmem:[#allocation3] sm:$0xf0] %v138
  %147 = vst [vmem:[#allocation3 + $0x8] sm:$0xf0] %v139
  %148 = vst [vmem:[#allocation3 + $0x50] sm:$0xf0] %v140
  %149 = vst [vmem:[#allocation3 + $0x58] sm:$0xf0] %v141
  %v150 = vld [vmem:[%s75] sm:$0xff]
  %v151 = vld [vmem:[%s75 + $0x8] sm:$0xf]
  %v152 = vld [vmem:[%s75 + $0x10] sm:$0xff]
  %v153 = vld [vmem:[%s75 + $0x18] sm:$0xf]
  %v158 = vcombine.high %v150, %v150
  %v159 = vcombine.high %v152, %v152
  %160 = vrot.lane.b32.xlu0 %v150, 15
  %v161 = vpop.permute.xlu0 %160
  %162 = vrot.lane.b32.xlu0 %v158, 15
  %v163 = vpop.permute.xlu0 %162
  %164 = vrot.lane.b32.xlu0 %v151, 15
  %v165 = vpop.permute.xlu0 %164
  %166 = vrot.lane.b32.xlu0 %v152, 15
  %v167 = vpop.permute.xlu0 %166
  %168 = vrot.lane.b32.xlu0 %v159, 15
  %v169 = vpop.permute.xlu0 %168
  %170 = vrot.lane.b32.xlu0 %v153, 15
  %v171 = vpop.permute.xlu0 %170
  %vm172 = vcmask 121856
  %v173 = vsel %vm172, %v161, %v163
  %v174 = vsel %vm172, %v163, %v165
  %v175 = vsel %vm172, %v167, %v169
  %v176 = vsel %vm172, %v169, %v171
  %181 = vst [vmem:[#allocation3 + $0x10] sm:$0xf] %v173
  %182 = vst [vmem:[#allocation3 + $0x18] sm:$0xf] %v174
  %183 = vst [vmem:[#allocation3 + $0x60] sm:$0xf] %v175
  %184 = vst [vmem:[#allocation3 + $0x68] sm:$0xf] %v176
  %v185 = vld [vmem:[#allocation2] sm:$0xff]
  %v186 = vld [vmem:[#allocation2 + $0x8] sm:$0xf]
  %v187 = vld [vmem:[#allocation2 + $0x10] sm:$0xff]
  %v188 = vld [vmem:[#allocation2 + $0x18] sm:$0xf]
  %v193 = vcombine.low %v185, %v185
  %v194 = vcombine.low %v186, %v186
  %v195 = vcombine.low %v187, %v187
  %v196 = vcombine.low %v188, %v188
  %197 = vrot.lane.b32.xlu0 %v193, 1
  %v198 = vpop.permute.xlu0 %197
  %199 = vrot.lane.b32.xlu0 %v185, 1
  %v200 = vpop.permute.xlu0 %199
  %201 = vrot.lane.b32.xlu0 %v194, 1
  %v202 = vpop.permute.xlu0 %201
  %203 = vrot.lane.b32.xlu0 %v195, 1
  %v204 = vpop.permute.xlu0 %203
  %205 = vrot.lane.b32.xlu0 %v187, 1
  %v206 = vpop.permute.xlu0 %205
  %207 = vrot.lane.b32.xlu0 %v196, 1
  %v208 = vpop.permute.xlu0 %207
  %vm209 = vcmask 7168
  %v210 = vsel %vm209, %v198, %v200
  %v211 = vsel %vm209, %v200, %v202
  %v212 = vsel %vm209, %v204, %v206
  %v213 = vsel %vm209, %v206, %v208
  %218 = vst [vmem:[#allocation3 + $0x10] sm:$0xf0] %v210
  %219 = vst [vmem:[#allocation3 + $0x18] sm:$0xf0] %v211
  %220 = vst [vmem:[#allocation3 + $0x60] sm:$0xf0] %v212
  %221 = vst [vmem:[#allocation3 + $0x68] sm:$0xf0] %v213
  %v222 = vld [vmem:[%s59 + $0x4] sm:$0xff]
  %v223 = vld [vmem:[%s59 + $0x14] sm:$0xff]
  %v226 = vcombine.high %v222, %v222
  %v227 = vcombine.high %v223, %v223
  %230 = vst [vmem:[#allocation3 + $0x20] sm:$0xf] %v222
  %231 = vst [vmem:[#allocation3 + $0x28] sm:$0xf] %v226
  %232 = vst [vmem:[#allocation3 + $0x70] sm:$0xf] %v223
  %233 = vst [vmem:[#allocation3 + $0x78] sm:$0xf] %v227
  %v234 = vld [vmem:[%s75 + $0x4] sm:$0xff]
  %v235 = vld [vmem:[%s75 + $0xc] sm:$0xf]
  %v236 = vld [vmem:[%s75 + $0x14] sm:$0xff]
  %v237 = vld [vmem:[%s75 + $0x1c] sm:$0xf]
  %v242 = vcombine.low %v234, %v234
  %v243 = vcombine.low %v235, %v235
  %v244 = vcombine.low %v236, %v236
  %v245 = vcombine.low %v237, %v237
  %246 = vrot.lane.b32.xlu0 %v242, 127
  %v247 = vpop.permute.xlu0 %246
  %248 = vrot.lane.b32.xlu0 %v234, 127
  %v249 = vpop.permute.xlu0 %248
  %250 = vrot.lane.b32.xlu0 %v243, 127
  %v251 = vpop.permute.xlu0 %250
  %252 = vrot.lane.b32.xlu0 %v244, 127
  %v253 = vpop.permute.xlu0 %252
  %254 = vrot.lane.b32.xlu0 %v236, 127
  %v255 = vpop.permute.xlu0 %254
  %256 = vrot.lane.b32.xlu0 %v245, 127
  %v257 = vpop.permute.xlu0 %256
  %vm258 = vcmask 1039360
  %v259 = vsel %vm258, %v247, %v249
  %v260 = vsel %vm258, %v249, %v251
  %v261 = vsel %vm258, %v253, %v255
  %v262 = vsel %vm258, %v255, %v257
  %267 = vst [vmem:[#allocation3 + $0x20] sm:$0xf0] %v259
  %268 = vst [vmem:[#allocation3 + $0x28] sm:$0xf0] %v260
  %269 = vst [vmem:[#allocation3 + $0x70] sm:$0xf0] %v261
  %270 = vst [vmem:[#allocation3 + $0x78] sm:$0xf0] %v262
  %v271 = vld [vmem:[#allocation2 + $0x4] sm:$0xff]
  %v272 = vld [vmem:[#allocation2 + $0xc] sm:$0xf]
  %v273 = vld [vmem:[#allocation2 + $0x14] sm:$0xff]
  %v274 = vld [vmem:[#allocation2 + $0x1c] sm:$0xf]
  %v279 = vcombine.high %v271, %v271
  %v280 = vcombine.high %v273, %v273
  %281 = vrot.lane.b32.xlu0 %v271, 113
  %v282 = vpop.permute.xlu0 %281
  %283 = vrot.lane.b32.xlu0 %v279, 113
  %v284 = vpop.permute.xlu0 %283
  %285 = vrot.lane.b32.xlu0 %v272, 113
  %v286 = vpop.permute.xlu0 %285
  %287 = vrot.lane.b32.xlu0 %v273, 113
  %v288 = vpop.permute.xlu0 %287
  %289 = vrot.lane.b32.xlu0 %v280, 113
  %v290 = vpop.permute.xlu0 %289
  %291 = vrot.lane.b32.xlu0 %v274, 113
  %v292 = vpop.permute.xlu0 %291
  %vm293 = vcmask 924672
  %v294 = vsel %vm293, %v282, %v284
  %v295 = vsel %vm293, %v284, %v286
  %v296 = vsel %vm293, %v288, %v290
  %v297 = vsel %vm293, %v290, %v292
  %302 = vst [vmem:[#allocation3 + $0x30] sm:$0xf] %v294
  %303 = vst [vmem:[#allocation3 + $0x38] sm:$0xf] %v295
  %304 = vst [vmem:[#allocation3 + $0x80] sm:$0xf] %v296
  %305 = vst [vmem:[#allocation3 + $0x88] sm:$0xf] %v297
  %v306 = vld [vmem:[%s59 + $0x4] sm:$0xff]
  %v307 = vld [vmem:[%s59 + $0xc] sm:$0xf]
  %v308 = vld [vmem:[%s59 + $0x14] sm:$0xff]
  %v309 = vld [vmem:[%s59 + $0x1c] sm:$0xf]
  %v314 = vcombine.low %v306, %v306
  %v315 = vcombine.low %v307, %v307
  %v316 = vcombine.low %v308, %v308
  %v317 = vcombine.low %v309, %v309
  %318 = vrot.lane.b32.xlu0 %v314, 112
  %v319 = vpop.permute.xlu0 %318
  %320 = vrot.lane.b32.xlu0 %v306, 112
  %v321 = vpop.permute.xlu0 %320
  %322 = vrot.lane.b32.xlu0 %v315, 112
  %v323 = vpop.permute.xlu0 %322
  %324 = vrot.lane.b32.xlu0 %v316, 112
  %v325 = vpop.permute.xlu0 %324
  %326 = vrot.lane.b32.xlu0 %v308, 112
  %v327 = vpop.permute.xlu0 %326
  %328 = vrot.lane.b32.xlu0 %v317, 112
  %v329 = vpop.permute.xlu0 %328
  %vm330 = vcmask 916480
  %v331 = vsel %vm330, %v319, %v321
  %v332 = vsel %vm330, %v321, %v323
  %v333 = vsel %vm330, %v325, %v327
  %v334 = vsel %vm330, %v327, %v329
  %339 = vst [vmem:[#allocation3 + $0x30] sm:$0xf0] %v331
  %340 = vst [vmem:[#allocation3 + $0x38] sm:$0xf0] %v332
  %341 = vst [vmem:[#allocation3 + $0x80] sm:$0xf0] %v333
  %342 = vst [vmem:[#allocation3 + $0x88] sm:$0xf0] %v334
  %v343 = vld [vmem:[%s75 + $0x4] sm:$0xff]
  %v344 = vld [vmem:[%s75 + $0xc] sm:$0xf]
  %v345 = vld [vmem:[%s75 + $0x14] sm:$0xff]
  %v346 = vld [vmem:[%s75 + $0x1c] sm:$0xf]
  %v351 = vcombine.high %v343, %v343
  %v352 = vcombine.high %v345, %v345
  %353 = vrot.lane.b32.xlu0 %v343, 111
  %v354 = vpop.permute.xlu0 %353
  %355 = vrot.lane.b32.xlu0 %v351, 111
  %v356 = vpop.permute.xlu0 %355
  %357 = vrot.lane.b32.xlu0 %v344, 111
  %v358 = vpop.permute.xlu0 %357
  %359 = vrot.lane.b32.xlu0 %v345, 111
  %v360 = vpop.permute.xlu0 %359
  %361 = vrot.lane.b32.xlu0 %v352, 111
  %v362 = vpop.permute.xlu0 %361
  %363 = vrot.lane.b32.xlu0 %v346, 111
  %v364 = vpop.permute.xlu0 %363
  %vm365 = vcmask 908288
  %v366 = vsel %vm365, %v354, %v356
  %v367 = vsel %vm365, %v356, %v358
  %v368 = vsel %vm365, %v360, %v362
  %v369 = vsel %vm365, %v362, %v364
  %374 = vst [vmem:[#allocation3 + $0x40] sm:$0xf] %v366
  %375 = vst [vmem:[#allocation3 + $0x48] sm:$0xf] %v367
  %376 = vst [vmem:[#allocation3 + $0x90] sm:$0xf] %v368
  %377 = vst [vmem:[#allocation3 + $0x98] sm:$0xf] %v369
  %v378 = vld [vmem:[%s1] sm:$0xf]
  %v379 = vld [vmem:[#allocation3] sm:$0xff]
  %v380 = vld [vmem:[#allocation3 + $0x8] sm:$0xff]
  %v381 = vld [vmem:[#allocation3 + $0x10] sm:$0xff]
  %v382 = vld [vmem:[#allocation3 + $0x18] sm:$0xff]
  %v383 = vld [vmem:[#allocation3 + $0x20] sm:$0xff]
  %v384 = vld [vmem:[#allocation3 + $0x28] sm:$0xff]
  %v385 = vld [vmem:[#allocation3 + $0x30] sm:$0xff]
  %v386 = vld [vmem:[#allocation3 + $0x38] sm:$0xff]
  %v387 = vld [vmem:[#allocation3 + $0x40] sm:$0xf]
  %v388 = vld [vmem:[#allocation3 + $0x48] sm:$0xf]
  %vm389 = vcmask 293888
  %v391 = vsel %vm389, %v378, 0
  %vm393 = vcmask 1043456
  %v395 = vsel %vm393, %v387, 0
  %v398 = vsel %vm393, %v388, 0
  %400 = vmatprep.subr.mxu0 %v380
  %401 = vmatpush1.msra.mxu0 %v379
  %402 = vmatprep.subr.mxu0 %v382
  %403 = vmatpush1.msra.mxu0 %v381
  %404 = vmatprep.subr.mxu0 %v384
  %405 = vmatpush1.msra.mxu0 %v383
  %406 = vmatprep.subr.mxu0 %v386
  %407 = vmatpush1.msra.mxu0 %v385
  %408 = vmatprep.subr.mxu0 %v398
  %409 = vmatpush1.msra.mxu0 %v395
  %410 = vmatprep.subr.mxu0 0.0
  %411 = vmatpush1.msra.mxu0 0.0
  %412 = vmatprep.subr.mxu0 0.0
  %413 = vmatpush1.msra.mxu0 0.0
  %414 = vmatprep.subr.mxu0 0.0
  %415 = vmatpush1.msra.mxu0 0.0
  %416 = vmatprep.subr.mxu0 0.0
  %417 = vmatpush1.msra.mxu0 0.0
  %418 = vmatprep.subr.mxu0 0.0
  %419 = vmatpush1.msra.mxu0 0.0
  %420 = vmatprep.subr.mxu0 0.0
  %421 = vmatpush1.msra.mxu0 0.0
  %422 = vmatprep.subr.mxu0 0.0
  %423 = vmatpush1.msra.mxu0 0.0
  %424 = vmatprep.subr.mxu0 0.0
  %425 = vmatpush1.msra.mxu0 0.0
  %426 = vmatprep.subr.mxu0 0.0
  %427 = vmatpush1.msra.mxu0 0.0
  %428 = vmatprep.subr.mxu0 0.0
  %429 = vmatpush1.msra.mxu0 0.0
  %430 = vmatprep.subr.mxu0 0.0
  %431 = vmatpush1.msra.mxu0 0.0
  %432 = vmatprep.subr.mxu0 0.0
  %433 = vmatpush1.msra.mxu0 0.0
  %434 = vmatprep.subr.mxu0 0.0
  %435 = vmatpush1.msra.mxu0 0.0
  %436 = vmatprep.subr.mxu0 0.0
  %437 = vmatpush1.msra.mxu0 0.0
  %438 = vmatprep.subr.mxu0 0.0
  %439 = vmatpush1.msra.mxu0 0.0
  %440 = vmatprep.subr.mxu0 0.0
  %441 = vmatpush1.msra.mxu0 0.0
  %442 = vmatprep.subr.mxu0 0.0
  %443 = vmatpush1.msra.mxu0 0.0
  %444 = vmatprep.subr.mxu0 0.0
  %445 = vmatpush1.msra.mxu0 0.0
  %446 = vmatprep.subr.mxu0 0.0
  %447 = vmatpush1.msra.mxu0 0.0
  %448 = vmatprep.subr.mxu0 0.0
  %449 = vmatpush1.msra.mxu0 0.0
  %450 = vmatprep.subr.mxu0 0.0
  %451 = vmatpush1.msra.mxu0 0.0
  %452 = vmatprep.subr.mxu0 0.0
  %453 = vmatpush1.msra.mxu0 0.0
  %454 = vmatprep.subr.mxu0 0.0
  %455 = vmatpush1.msra.mxu0 0.0
  %456 = vmatprep.subr.mxu0 0.0
  %457 = vmatpush1.msra.mxu0 0.0
  %458 = vmatprep.subr.mxu0 0.0
  %459 = vmatpush1.msra.mxu0 0.0
  %460 = vmatprep.subr.mxu0 0.0
  %461 = vmatpush1.msra.mxu0 0.0
  %462 = vmatprep.subr.mxu0 0.0
  %463 = vmatpush1.msra.mxu0 0.0
  %464 = vmatprep.mubr.f32.mxu0 0.0
  %465 = vmatmul.mubr.f32.gmra.mrb[0].mxu0 %v391
  %v466 = vpop.f32.mrb[0].mxu0
  %v467 = vadd.f32 0.0, %v466
  %v468 = vpop.f32.mrb[0].mxu0
  %v469 = vadd.f32 0.0, %v468
  %470 = vdwg.mxu0
  %s471 = smul.u32 0, 2
  %v474 = vcombine.low %v467, %v469
  %s476 = smul.u32 %s471, 2
  %s477 = smul.addr %s476, 4
  %s478 = scalar_lea.vmem %s6, %s477
  %479 = vst [vmem:[%s478] sm:$0xff] %v474
  %s480 = scalar_lea.vmem [#allocation3], 80
  %v481 = vld [vmem:[%s480] sm:$0xff]
  %v482 = vld [vmem:[%s480 + $0x8] sm:$0xff]
  %v483 = vld [vmem:[%s480 + $0x10] sm:$0xff]
  %v484 = vld [vmem:[%s480 + $0x18] sm:$0xff]
  %v485 = vld [vmem:[%s480 + $0x20] sm:$0xff]
  %v486 = vld [vmem:[%s480 + $0x28] sm:$0xff]
  %v487 = vld [vmem:[%s480 + $0x30] sm:$0xff]
  %v488 = vld [vmem:[%s480 + $0x38] sm:$0xff]
  %v489 = vld [vmem:[%s480 + $0x40] sm:$0xf]
  %v490 = vld [vmem:[%s480 + $0x48] sm:$0xf]
  %v492 = vsel %vm393, %v489, 0
  %v495 = vsel %vm393, %v490, 0
  %497 = vmatprep.subr.mxu0 %v482
  %498 = vmatpush1.msra.mxu0 %v481
  %499 = vmatprep.subr.mxu0 %v484
  %500 = vmatpush1.msra.mxu0 %v483
  %501 = vmatprep.subr.mxu0 %v486
  %502 = vmatpush1.msra.mxu0 %v485
  %503 = vmatprep.subr.mxu0 %v488
  %504 = vmatpush1.msra.mxu0 %v487
  %505 = vmatprep.subr.mxu0 %v495
  %506 = vmatpush1.msra.mxu0 %v492
  %507 = vmatprep.subr.mxu0 0.0
  %508 = vmatpush1.msra.mxu0 0.0
  %509 = vmatprep.subr.mxu0 0.0
  %510 = vmatpush1.msra.mxu0 0.0
  %511 = vmatprep.subr.mxu0 0.0
  %512 = vmatpush1.msra.mxu0 0.0
  %513 = vmatprep.subr.mxu0 0.0
  %514 = vmatpush1.msra.mxu0 0.0
  %515 = vmatprep.subr.mxu0 0.0
  %516 = vmatpush1.msra.mxu0 0.0
  %517 = vmatprep.subr.mxu0 0.0
  %518 = vmatpush1.msra.mxu0 0.0
  %519 = vmatprep.subr.mxu0 0.0
  %520 = vmatpush1.msra.mxu0 0.0
  %521 = vmatprep.subr.mxu0 0.0
  %522 = vmatpush1.msra.mxu0 0.0
  %523 = vmatprep.subr.mxu0 0.0
  %524 = vmatpush1.msra.mxu0 0.0
  %525 = vmatprep.subr.mxu0 0.0
  %526 = vmatpush1.msra.mxu0 0.0
  %527 = vmatprep.subr.mxu0 0.0
  %528 = vmatpush1.msra.mxu0 0.0
  %529 = vmatprep.subr.mxu0 0.0
  %530 = vmatpush1.msra.mxu0 0.0
  %531 = vmatprep.subr.mxu0 0.0
  %532 = vmatpush1.msra.mxu0 0.0
  %533 = vmatprep.subr.mxu0 0.0
  %534 = vmatpush1.msra.mxu0 0.0
  %535 = vmatprep.subr.mxu0 0.0
  %536 = vmatpush1.msra.mxu0 0.0
  %537 = vmatprep.subr.mxu0 0.0
  %538 = vmatpush1.msra.mxu0 0.0
  %539 = vmatprep.subr.mxu0 0.0
  %540 = vmatpush1.msra.mxu0 0.0
  %541 = vmatprep.subr.mxu0 0.0
  %542 = vmatpush1.msra.mxu0 0.0
  %543 = vmatprep.subr.mxu0 0.0
  %544 = vmatpush1.msra.mxu0 0.0
  %545 = vmatprep.subr.mxu0 0.0
  %546 = vmatpush1.msra.mxu0 0.0
  %547 = vmatprep.subr.mxu0 0.0
  %548 = vmatpush1.msra.mxu0 0.0
  %549 = vmatprep.subr.mxu0 0.0
  %550 = vmatpush1.msra.mxu0 0.0
  %551 = vmatprep.subr.mxu0 0.0
  %552 = vmatpush1.msra.mxu0 0.0
  %553 = vmatprep.subr.mxu0 0.0
  %554 = vmatpush1.msra.mxu0 0.0
  %555 = vmatprep.subr.mxu0 0.0
  %556 = vmatpush1.msra.mxu0 0.0
  %557 = vmatprep.subr.mxu0 0.0
  %558 = vmatpush1.msra.mxu0 0.0
  %559 = vmatprep.subr.mxu0 0.0
  %560 = vmatpush1.msra.mxu0 0.0
  %561 = vmatprep.mubr.f32.mxu0 0.0
  %562 = vmatmul.mubr.f32.gmra.mrb[0].mxu0 %v391
  %v563 = vpop.f32.mrb[0].mxu0
  %v564 = vadd.f32 0.0, %v563
  %v565 = vpop.f32.mrb[0].mxu0
  %v566 = vadd.f32 0.0, %v565
  %567 = vdwg.mxu0
  %s568 = sadd.s32 %s471, 1
  %v571 = vcombine.low %v564, %v566
  %s573 = smul.u32 %s568, 2
  %s574 = smul.addr %s573, 4
  %s575 = scalar_lea.vmem %s6, %s574
  %576 = vst [vmem:[%s575] sm:$0xff] %v571
  // Predicated region
  $region30: #{residual_block.3} parent=0 // pred_check
    %p577 = pneg %p23
  $region31: #{residual_block.3} parent=0 // pred_check_branch
    %579 = sbr.rel (%p577) target = $region33
  $region32: #{residual_block.3} parent=0 // pred_region
    %v580 = vld [vmem:[%s6] sm:$0xff]
    %v581 = vld [vmem:[%s6 + $0x8] sm:$0xff]
    %v584 = vcombine.high %v580, %v580
    %v585 = vcombine.high %v581, %v581
    %v588 = vsel %vm393, %v580, 0.0
    %v589 = vsel %vm393, %v584, 0.0
    %v590 = vadd.f32 %v588, %v589
    %591 = vadd.xlane.f32.xlu0 %v590
    %v592 = vpop.xlane.xlu0 %591
    %v593 = vsel %vm393, %v581, 0.0
    %v594 = vsel %vm393, %v585, 0.0
    %v595 = vadd.f32 %v593, %v594
    %596 = vadd.xlane.f32.xlu0 %v595
    %v597 = vpop.xlane.xlu0 %596
    %v598 = vsel %vm393, %v592, 0.0
    %v599 = vsel %vm393, %v597, 0.0
    %v600 = vadd.f32 %v598, %v599
    %v601 = vmul.f32 %v600, 0.001953125
    %v604 = vunpack.c.l.s4 839922192
    %v605 = vunpack.c.0.s8 %v604
    %v606 = vlaneseq
    %v607 = vshrl.u32 %v606, 7
    %v608 = vsub.s32 %v605, %v607
    %v609 = vrot.slane %v601, %v608
    %v611 = vsub.f32 %v580, %v609
    %v612 = vsub.f32 %v581, %v609
    %v613 = vmul.f32 %v611, %v611
    %v614 = vmul.f32 %v612, %v612
    %v617 = vcombine.high %v613, %v613
    %v618 = vcombine.high %v614, %v614
    %v621 = vsel %vm393, %v613, 0.0
    %v622 = vsel %vm393, %v617, 0.0
    %v623 = vadd.f32 %v621, %v622
    %624 = vadd.xlane.f32.xlu0 %v623
    %v625 = vpop.xlane.xlu0 %624
    %v626 = vsel %vm393, %v614, 0.0
    %v627 = vsel %vm393, %v618, 0.0
    %v628 = vadd.f32 %v626, %v627
    %629 = vadd.xlane.f32.xlu0 %v628
    %v630 = vpop.xlane.xlu0 %629
    %v631 = vsel %vm393, %v625, 0.0
    %v632 = vsel %vm393, %v630, 0.0
    %v633 = vadd.f32 %v631, %v632
    %v634 = vmul.f32 %v633, 0.001953125
    %v635 = vld [vmem:[%s3] sm:$0xf]
    %v636 = vadd.f32 %v634, 1e-05
    %v637 = vrsqrt.pop %v636
    %v638 = vmul.f32 %v635, %v637
    %v639 = vld [vmem:[%s4] sm:$0xf]
    %v640 = vmul.f32 %v601, %v638
    %v641 = vsub.f32 %v639, %v640
    %643 = vset.pattern.permute.xlu0 0
    %644 = vperm.xlu0 %643, %v638
    %v645 = vpop.permute.xlu0 %644
    %v647 = vunpack.c.l.s4 839922192
    %v648 = vunpack.c.0.s8 %v647
    %v649 = vlaneseq
    %v650 = vshrl.u32 %v649, 7
    %v651 = vsub.s32 %v648, %v650
    %v652 = vrot.slane %v645, %v651
    %v654 = vmul.f32 %v580, %v652
    %v655 = vmul.f32 %v581, %v652
    %657 = vset.pattern.permute.xlu0 0
    %658 = vperm.xlu0 %657, %v641
    %v659 = vpop.permute.xlu0 %658
    %v661 = vunpack.c.l.s4 839922192
    %v662 = vunpack.c.0.s8 %v661
    %v663 = vlaneseq
    %v664 = vshrl.u32 %v663, 7
    %v665 = vsub.s32 %v662, %v664
    %v666 = vrot.slane %v659, %v665
    %v668 = vadd.f32 %v654, %v666
    %v669 = vadd.f32 %v655, %v666
    %v670 = vld [vmem:[%s5] sm:$0xff]
    %v671 = vld [vmem:[%s5 + $0x8] sm:$0xff]
    %v672 = vadd.f32 %v668, %v670
    %v673 = vadd.f32 %v669, %v671
    %v674 = vmax.f32 %v672, 0.0
    %v675 = vmax.f32 %v673, 0.0
    %676 = vst [vmem:[%s6] sm:$0xff] %v674
    %677 = vst [vmem:[%s6 + $0x8] sm:$0xff] %v675
  $region33: #{residual_block.3} parent=0 // pred_fallthru
    _
  // Predicated region
  $region34: #{residual_block.3} parent=0 // pred_check
    _
  $region35: #{residual_block.3} parent=0 // pred_check_branch
    %679 = sbr.rel (0) target = $region37
  $region36: #{residual_block.3} parent=0 // pred_region
    _
  $region37: #{residual_block.3} parent=0 // pred_fallthru
    _
  // Predicated region
  $region38: #{residual_block.3} parent=0 // pred_check
    _
  $region39: #{residual_block.3} parent=0 // pred_check_branch
    %681 = sbr.rel (0) target = $region41
  $region40: #{residual_block.3} parent=0 // pred_region
    _
  $region41: #{residual_block.3} parent=0 // pred_fallthru
    _

// kernel: residual_block.2
$region0: #{residual_block.2}
  #allocation0 [shape = 'u32[]', space=smem, size = 0x4, offset = 0x4, fixed_abs, tag = 'smem constant byte address 0x4 - core index']
  #allocation1 [shape = 'u32[144,128]{1,0:T(1,128)}', space=vmem, size = 0x12000, scoped, tag = 'internal scratch']
  #allocation2 [shape = 'f32[3,2,4,512]{3,2,1,0:T(4,128)}', space=vmem, size = 0xc000, scoped, tag = 'scratch operand']
  #allocation3 [shape = 'f32[2,36,256]{2,1,0:T(8,128)}', space=vmem, size = 0x14000, scoped, tag = 'scratch operand']
  %s0 = inlined_call_operand.vmem [shape: f32[2,4,256], index: 0, kind: input, shape index: {}]
  %s1 = inlined_call_operand.vmem [shape: f32[4,36], index: 1, kind: input, shape index: {}]
  %s2 = inlined_call_operand.vmem [shape: f32[2,256], index: 2, kind: input, shape index: {}]
  %s3 = inlined_call_operand.vmem [shape: f32[4,1], index: 3, kind: input, shape index: {}]
  %s4 = inlined_call_operand.vmem [shape: f32[4,1], index: 4, kind: input, shape index: {}]
  %s5 = inlined_call_operand.vmem [shape: f32[2,4,256], index: 5, kind: output, shape index: {}]
  %s6 = sld [smem:[#allocation0]]
  $region38: #{residual_block.2} parent=0
    _
  %s8 = ssub.s32 1, %s6
  %s9 = scalar_select 0, %s8, %s6
  // Predicated region
  $region2: #{residual_block.2} parent=0 // pred_check
    _
  $region3: #{residual_block.2} parent=0 // pred_check_branch
    %11 = sbr.rel (0) target = $region5
  $region4: #{residual_block.2} parent=0 // pred_region
    _
  $region5: #{residual_block.2} parent=0 // pred_fallthru
    _
  // Predicated region
  $region6: #{residual_block.2} parent=0 // pred_check
    _
  $region7: #{residual_block.2} parent=0 // pred_check_branch
    %13 = sbr.rel (0) target = $region9
  $region8: #{residual_block.2} parent=0 // pred_region
    _
  $region9: #{residual_block.2} parent=0 // pred_fallthru
    _
  // Predicated region
  $region10: #{residual_block.2} parent=0 // pred_check
    _
  $region11: #{residual_block.2} parent=0 // pred_check_branch
    %15 = sbr.rel (0) target = $region13
  $region12: #{residual_block.2} parent=0 // pred_region
    _
  $region13: #{residual_block.2} parent=0 // pred_fallthru
    _
  // Predicated region
  $region14: #{residual_block.2} parent=0 // pred_check
    _
  $region15: #{residual_block.2} parent=0 // pred_check_branch
    %17 = sbr.rel (0) target = $region17
  $region16: #{residual_block.2} parent=0 // pred_region
    _
  $region17: #{residual_block.2} parent=0 // pred_fallthru
    _
  // Predicated region
  $region18: #{residual_block.2} parent=0 // pred_check
    _
  $region19: #{residual_block.2} parent=0 // pred_check_branch
    %19 = sbr.rel (0) target = $region21
  $region20: #{residual_block.2} parent=0 // pred_region
    _
  $region21: #{residual_block.2} parent=0 // pred_fallthru
    _
  %p20 = scmp.eq.s32.totalorder 0, 0
  // Predicated region
  $region22: #{residual_block.2} parent=0 // pred_check
    %p21 = pneg %p20
  $region23: #{residual_block.2} parent=0 // pred_check_branch
    %23 = sbr.rel (%p21) target = $region25
  $region24: #{residual_block.2} parent=0 // pred_region
    %24 = vst [vmem:[#allocation2] sm:$0xff] 0.0
    %25 = vst [vmem:[#allocation2 + $0x8] sm:$0xff] 0.0
    %26 = vst [vmem:[#allocation2 + $0x10] sm:$0xff] 0.0
    %27 = vst [vmem:[#allocation2 + $0x18] sm:$0xff] 0.0
    %28 = vst [vmem:[#allocation2 + $0x20] sm:$0xff] 0.0
    %29 = vst [vmem:[#allocation2 + $0x28] sm:$0xff] 0.0
    %30 = vst [vmem:[#allocation2 + $0x30] sm:$0xff] 0.0
    %31 = vst [vmem:[#allocation2 + $0x38] sm:$0xff] 0.0
    %32 = vst [vmem:[#allocation2 + $0x40] sm:$0xff] 0.0
    %33 = vst [vmem:[#allocation2 + $0x48] sm:$0xff] 0.0
    %34 = vst [vmem:[#allocation2 + $0x50] sm:$0xff] 0.0
    %35 = vst [vmem:[#allocation2 + $0x58] sm:$0xff] 0.0
  $region25: #{residual_block.2} parent=0 // pred_fallthru
    _
  %v36 = vld [vmem:[%s0] sm:$0xff]
  %v37 = vld [vmem:[%s0 + $0x8] sm:$0xff]
  %v38 = vld [vmem:[%s2] ss:$2 sm:$0x3]
  %s39 = scalar_lea.vmem %s2, 1
  %v40 = vld [vmem:[%s39] ss:$2 sm:$0x3]
  %v42 = vlaneseq
  %v43 = vshrl.u32 %v42, 7
  %v44 = vsub.s32 0, %v43
  %v45 = vrot.slane %v38, %v44
  %v46 = vlaneseq
  %v47 = vshrl.u32 %v46, 7
  %v48 = vsub.s32 1, %v47
  %v49 = vrot.slane %v38, %v48
  %v50 = vcombine.low %v45, %v49
  %v52 = vmul.f32 %v36, %v50
  %v53 = vmul.f32 %v37, %v50
  %54 = vst [vmem:[#allocation2 + $0x4] sm:$0xff] %v52
  %55 = vst [vmem:[#allocation2 + $0x14] sm:$0xff] %v53
  %s56 = scalar_lea.vmem [#allocation2], 32
  %57 = vst [vmem:[%s56 + $0x4] sm:$0xff] %v36
  %58 = vst [vmem:[%s56 + $0x14] sm:$0xff] %v37
  %v60 = vlaneseq
  %v61 = vshrl.u32 %v60, 7
  %v62 = vsub.s32 0, %v61
  %v63 = vrot.slane %v40, %v62
  %v64 = vlaneseq
  %v65 = vshrl.u32 %v64, 7
  %v66 = vsub.s32 1, %v65
  %v67 = vrot.slane %v40, %v66
  %v68 = vcombine.low %v63, %v67
  %v70 = vmul.f32 %v36, %v68
  %v71 = vmul.f32 %v37, %v68
  %s72 = scalar_lea.vmem [#allocation2], 64
  %73 = vst [vmem:[%s72 + $0x4] sm:$0xff] %v70
  %74 = vst [vmem:[%s72 + $0x14] sm:$0xff] %v71
  %v75 = vld [vmem:[#allocation2] sm:$0xff]
  %v76 = vld [vmem:[#allocation2 + $0x8] sm:$0xf]
  %v77 = vld [vmem:[#allocation2 + $0x10] sm:$0xff]
  %v78 = vld [vmem:[#allocation2 + $0x18] sm:$0xf]
  %v83 = vcombine.high %v75, %v75
  %v84 = vcombine.high %v77, %v77
  %85 = vrot.lane.b32.xlu0 %v75, 17
  %v86 = vpop.permute.xlu0 %85
  %87 = vrot.lane.b32.xlu0 %v83, 17
  %v88 = vpop.permute.xlu0 %87
  %89 = vrot.lane.b32.xlu0 %v76, 17
  %v90 = vpop.permute.xlu0 %89
  %91 = vrot.lane.b32.xlu0 %v77, 17
  %v92 = vpop.permute.xlu0 %91
  %93 = vrot.lane.b32.xlu0 %v84, 17
  %v94 = vpop.permute.xlu0 %93
  %95 = vrot.lane.b32.xlu0 %v78, 17
  %v96 = vpop.permute.xlu0 %95
  %vm97 = vcmask 138240
  %v98 = vsel %vm97, %v86, %v88
  %v99 = vsel %vm97, %v88, %v90
  %v100 = vsel %vm97, %v92, %v94
  %v101 = vsel %vm97, %v94, %v96
  %106 = vst [vmem:[#allocation3] sm:$0xf] %v98
  %107 = vst [vmem:[#allocation3 + $0x8] sm:$0xf] %v99
  %108 = vst [vmem:[#allocation3 + $0x50] sm:$0xf] %v100
  %109 = vst [vmem:[#allocation3 + $0x58] sm:$0xf] %v101
  %v110 = vld [vmem:[%s56] sm:$0xff]
  %v111 = vld [vmem:[%s56 + $0x8] sm:$0xf]
  %v112 = vld [vmem:[%s56 + $0x10] sm:$0xff]
  %v113 = vld [vmem:[%s56 + $0x18] sm:$0xf]
  %v118 = vcombine.low %v110, %v110
  %v119 = vcombine.low %v111, %v111
  %v120 = vcombine.low %v112, %v112
  %v121 = vcombine.low %v113, %v113
  %122 = vrot.lane.b32.xlu0 %v118, 16
  %v123 = vpop.permute.xlu0 %122
  %124 = vrot.lane.b32.xlu0 %v110, 16
  %v125 = vpop.permute.xlu0 %124
  %126 = vrot.lane.b32.xlu0 %v119, 16
  %v127 = vpop.permute.xlu0 %126
  %128 = vrot.lane.b32.xlu0 %v120, 16
  %v129 = vpop.permute.xlu0 %128
  %130 = vrot.lane.b32.xlu0 %v112, 16
  %v131 = vpop.permute.xlu0 %130
  %132 = vrot.lane.b32.xlu0 %v121, 16
  %v133 = vpop.permute.xlu0 %132
  %vm134 = vcmask 130048
  %v135 = vsel %vm134, %v123, %v125
  %v136 = vsel %vm134, %v125, %v127
  %v137 = vsel %vm134, %v129, %v131
  %v138 = vsel %vm134, %v131, %v133
  %143 = vst [vmem:[#allocation3] sm:$0xf0] %v135
  %144 = vst [vmem:[#allocation3 + $0x8] sm:$0xf0] %v136
  %145 = vst [vmem:[#allocation3 + $0x50] sm:$0xf0] %v137
  %146 = vst [vmem:[#allocation3 + $0x58] sm:$0xf0] %v138
  %v147 = vld [vmem:[%s72] sm:$0xff]
  %v148 = vld [vmem:[%s72 + $0x8] sm:$0xf]
  %v149 = vld [vmem:[%s72 + $0x10] sm:$0xff]
  %v150 = vld [vmem:[%s72 + $0x18] sm:$0xf]
  %v155 = vcombine.high %v147, %v147
  %v156 = vcombine.high %v149, %v149
  %157 = vrot.lane.b32.xlu0 %v147, 15
  %v158 = vpop.permute.xlu0 %157
  %159 = vrot.lane.b32.xlu0 %v155, 15
  %v160 = vpop.permute.xlu0 %159
  %161 = vrot.lane.b32.xlu0 %v148, 15
  %v162 = vpop.permute.xlu0 %161
  %163 = vrot.lane.b32.xlu0 %v149, 15
  %v164 = vpop.permute.xlu0 %163
  %165 = vrot.lane.b32.xlu0 %v156, 15
  %v166 = vpop.permute.xlu0 %165
  %167 = vrot.lane.b32.xlu0 %v150, 15
  %v168 = vpop.permute.xlu0 %167
  %vm169 = vcmask 121856
  %v170 = vsel %vm169, %v158, %v160
  %v171 = vsel %vm169, %v160, %v162
  %v172 = vsel %vm169, %v164, %v166
  %v173 = vsel %vm169, %v166, %v168
  %178 = vst [vmem:[#allocation3 + $0x10] sm:$0xf] %v170
  %179 = vst [vmem:[#allocation3 + $0x18] sm:$0xf] %v171
  %180 = vst [vmem:[#allocation3 + $0x60] sm:$0xf] %v172
  %181 = vst [vmem:[#allocation3 + $0x68] sm:$0xf] %v173
  %v182 = vld [vmem:[#allocation2] sm:$0xff]
  %v183 = vld [vmem:[#allocation2 + $0x8] sm:$0xf]
  %v184 = vld [vmem:[#allocation2 + $0x10] sm:$0xff]
  %v185 = vld [vmem:[#allocation2 + $0x18] sm:$0xf]
  %v190 = vcombine.low %v182, %v182
  %v191 = vcombine.low %v183, %v183
  %v192 = vcombine.low %v184, %v184
  %v193 = vcombine.low %v185, %v185
  %194 = vrot.lane.b32.xlu0 %v190, 1
  %v195 = vpop.permute.xlu0 %194
  %196 = vrot.lane.b32.xlu0 %v182, 1
  %v197 = vpop.permute.xlu0 %196
  %198 = vrot.lane.b32.xlu0 %v191, 1
  %v199 = vpop.permute.xlu0 %198
  %200 = vrot.lane.b32.xlu0 %v192, 1
  %v201 = vpop.permute.xlu0 %200
  %202 = vrot.lane.b32.xlu0 %v184, 1
  %v203 = vpop.permute.xlu0 %202
  %204 = vrot.lane.b32.xlu0 %v193, 1
  %v205 = vpop.permute.xlu0 %204
  %vm206 = vcmask 7168
  %v207 = vsel %vm206, %v195, %v197
  %v208 = vsel %vm206, %v197, %v199
  %v209 = vsel %vm206, %v201, %v203
  %v210 = vsel %vm206, %v203, %v205
  %215 = vst [vmem:[#allocation3 + $0x10] sm:$0xf0] %v207
  %216 = vst [vmem:[#allocation3 + $0x18] sm:$0xf0] %v208
  %217 = vst [vmem:[#allocation3 + $0x60] sm:$0xf0] %v209
  %218 = vst [vmem:[#allocation3 + $0x68] sm:$0xf0] %v210
  %v219 = vld [vmem:[%s56 + $0x4] sm:$0xff]
  %v220 = vld [vmem:[%s56 + $0x14] sm:$0xff]
  %v223 = vcombine.high %v219, %v219
  %v224 = vcombine.high %v220, %v220
  %227 = vst [vmem:[#allocation3 + $0x20] sm:$0xf] %v219
  %228 = vst [vmem:[#allocation3 + $0x28] sm:$0xf] %v223
  %229 = vst [vmem:[#allocation3 + $0x70] sm:$0xf] %v220
  %230 = vst [vmem:[#allocation3 + $0x78] sm:$0xf] %v224
  %v231 = vld [vmem:[%s72 + $0x4] sm:$0xff]
  %v232 = vld [vmem:[%s72 + $0xc] sm:$0xf]
  %v233 = vld [vmem:[%s72 + $0x14] sm:$0xff]
  %v234 = vld [vmem:[%s72 + $0x1c] sm:$0xf]
  %v239 = vcombine.low %v231, %v231
  %v240 = vcombine.low %v232, %v232
  %v241 = vcombine.low %v233, %v233
  %v242 = vcombine.low %v234, %v234
  %243 = vrot.lane.b32.xlu0 %v239, 127
  %v244 = vpop.permute.xlu0 %243
  %245 = vrot.lane.b32.xlu0 %v231, 127
  %v246 = vpop.permute.xlu0 %245
  %247 = vrot.lane.b32.xlu0 %v240, 127
  %v248 = vpop.permute.xlu0 %247
  %249 = vrot.lane.b32.xlu0 %v241, 127
  %v250 = vpop.permute.xlu0 %249
  %251 = vrot.lane.b32.xlu0 %v233, 127
  %v252 = vpop.permute.xlu0 %251
  %253 = vrot.lane.b32.xlu0 %v242, 127
  %v254 = vpop.permute.xlu0 %253
  %vm255 = vcmask 1039360
  %v256 = vsel %vm255, %v244, %v246
  %v257 = vsel %vm255, %v246, %v248
  %v258 = vsel %vm255, %v250, %v252
  %v259 = vsel %vm255, %v252, %v254
  %264 = vst [vmem:[#allocation3 + $0x20] sm:$0xf0] %v256
  %265 = vst [vmem:[#allocation3 + $0x28] sm:$0xf0] %v257
  %266 = vst [vmem:[#allocation3 + $0x70] sm:$0xf0] %v258
  %267 = vst [vmem:[#allocation3 + $0x78] sm:$0xf0] %v259
  %v268 = vld [vmem:[#allocation2 + $0x4] sm:$0xff]
  %v269 = vld [vmem:[#allocation2 + $0xc] sm:$0xf]
  %v270 = vld [vmem:[#allocation2 + $0x14] sm:$0xff]
  %v271 = vld [vmem:[#allocation2 + $0x1c] sm:$0xf]
  %v276 = vcombine.high %v268, %v268
  %v277 = vcombine.high %v270, %v270
  %278 = vrot.lane.b32.xlu0 %v268, 113
  %v279 = vpop.permute.xlu0 %278
  %280 = vrot.lane.b32.xlu0 %v276, 113
  %v281 = vpop.permute.xlu0 %280
  %282 = vrot.lane.b32.xlu0 %v269, 113
  %v283 = vpop.permute.xlu0 %282
  %284 = vrot.lane.b32.xlu0 %v270, 113
  %v285 = vpop.permute.xlu0 %284
  %286 = vrot.lane.b32.xlu0 %v277, 113
  %v287 = vpop.permute.xlu0 %286
  %288 = vrot.lane.b32.xlu0 %v271, 113
  %v289 = vpop.permute.xlu0 %288
  %vm290 = vcmask 924672
  %v291 = vsel %vm290, %v279, %v281
  %v292 = vsel %vm290, %v281, %v283
  %v293 = vsel %vm290, %v285, %v287
  %v294 = vsel %vm290, %v287, %v289
  %299 = vst [vmem:[#allocation3 + $0x30] sm:$0xf] %v291
  %300 = vst [vmem:[#allocation3 + $0x38] sm:$0xf] %v292
  %301 = vst [vmem:[#allocation3 + $0x80] sm:$0xf] %v293
  %302 = vst [vmem:[#allocation3 + $0x88] sm:$0xf] %v294
  %v303 = vld [vmem:[%s56 + $0x4] sm:$0xff]
  %v304 = vld [vmem:[%s56 + $0xc] sm:$0xf]
  %v305 = vld [vmem:[%s56 + $0x14] sm:$0xff]
  %v306 = vld [vmem:[%s56 + $0x1c] sm:$0xf]
  %v311 = vcombine.low %v303, %v303
  %v312 = vcombine.low %v304, %v304
  %v313 = vcombine.low %v305, %v305
  %v314 = vcombine.low %v306, %v306
  %315 = vrot.lane.b32.xlu0 %v311, 112
  %v316 = vpop.permute.xlu0 %315
  %317 = vrot.lane.b32.xlu0 %v303, 112
  %v318 = vpop.permute.xlu0 %317
  %319 = vrot.lane.b32.xlu0 %v312, 112
  %v320 = vpop.permute.xlu0 %319
  %321 = vrot.lane.b32.xlu0 %v313, 112
  %v322 = vpop.permute.xlu0 %321
  %323 = vrot.lane.b32.xlu0 %v305, 112
  %v324 = vpop.permute.xlu0 %323
  %325 = vrot.lane.b32.xlu0 %v314, 112
  %v326 = vpop.permute.xlu0 %325
  %vm327 = vcmask 916480
  %v328 = vsel %vm327, %v316, %v318
  %v329 = vsel %vm327, %v318, %v320
  %v330 = vsel %vm327, %v322, %v324
  %v331 = vsel %vm327, %v324, %v326
  %336 = vst [vmem:[#allocation3 + $0x30] sm:$0xf0] %v328
  %337 = vst [vmem:[#allocation3 + $0x38] sm:$0xf0] %v329
  %338 = vst [vmem:[#allocation3 + $0x80] sm:$0xf0] %v330
  %339 = vst [vmem:[#allocation3 + $0x88] sm:$0xf0] %v331
  %v340 = vld [vmem:[%s72 + $0x4] sm:$0xff]
  %v341 = vld [vmem:[%s72 + $0xc] sm:$0xf]
  %v342 = vld [vmem:[%s72 + $0x14] sm:$0xff]
  %v343 = vld [vmem:[%s72 + $0x1c] sm:$0xf]
  %v348 = vcombine.high %v340, %v340
  %v349 = vcombine.high %v342, %v342
  %350 = vrot.lane.b32.xlu0 %v340, 111
  %v351 = vpop.permute.xlu0 %350
  %352 = vrot.lane.b32.xlu0 %v348, 111
  %v353 = vpop.permute.xlu0 %352
  %354 = vrot.lane.b32.xlu0 %v341, 111
  %v355 = vpop.permute.xlu0 %354
  %356 = vrot.lane.b32.xlu0 %v342, 111
  %v357 = vpop.permute.xlu0 %356
  %358 = vrot.lane.b32.xlu0 %v349, 111
  %v359 = vpop.permute.xlu0 %358
  %360 = vrot.lane.b32.xlu0 %v343, 111
  %v361 = vpop.permute.xlu0 %360
  %vm362 = vcmask 908288
  %v363 = vsel %vm362, %v351, %v353
  %v364 = vsel %vm362, %v353, %v355
  %v365 = vsel %vm362, %v357, %v359
  %v366 = vsel %vm362, %v359, %v361
  %371 = vst [vmem:[#allocation3 + $0x40] sm:$0xf] %v363
  %372 = vst [vmem:[#allocation3 + $0x48] sm:$0xf] %v364
  %373 = vst [vmem:[#allocation3 + $0x90] sm:$0xf] %v365
  %374 = vst [vmem:[#allocation3 + $0x98] sm:$0xf] %v366
  %v375 = vld [vmem:[%s1] sm:$0xf]
  %v376 = vld [vmem:[#allocation3] sm:$0xff]
  %v377 = vld [vmem:[#allocation3 + $0x8] sm:$0xff]
  %v378 = vld [vmem:[#allocation3 + $0x10] sm:$0xff]
  %v379 = vld [vmem:[#allocation3 + $0x18] sm:$0xff]
  %v380 = vld [vmem:[#allocation3 + $0x20] sm:$0xff]
  %v381 = vld [vmem:[#allocation3 + $0x28] sm:$0xff]
  %v382 = vld [vmem:[#allocation3 + $0x30] sm:$0xff]
  %v383 = vld [vmem:[#allocation3 + $0x38] sm:$0xff]
  %v384 = vld [vmem:[#allocation3 + $0x40] sm:$0xf]
  %v385 = vld [vmem:[#allocation3 + $0x48] sm:$0xf]
  %vm386 = vcmask 293888
  %v388 = vsel %vm386, %v375, 0
  %vm390 = vcmask 1043456
  %v392 = vsel %vm390, %v384, 0
  %v395 = vsel %vm390, %v385, 0
  %397 = vmatprep.subr.mxu0 %v377
  %398 = vmatpush1.msra.mxu0 %v376
  %399 = vmatprep.subr.mxu0 %v379
  %400 = vmatpush1.msra.mxu0 %v378
  %401 = vmatprep.subr.mxu0 %v381
  %402 = vmatpush1.msra.mxu0 %v380
  %403 = vmatprep.subr.mxu0 %v383
  %404 = vmatpush1.msra.mxu0 %v382
  %405 = vmatprep.subr.mxu0 %v395
  %406 = vmatpush1.msra.mxu0 %v392
  %407 = vmatprep.subr.mxu0 0.0
  %408 = vmatpush1.msra.mxu0 0.0
  %409 = vmatprep.subr.mxu0 0.0
  %410 = vmatpush1.msra.mxu0 0.0
  %411 = vmatprep.subr.mxu0 0.0
  %412 = vmatpush1.msra.mxu0 0.0
  %413 = vmatprep.subr.mxu0 0.0
  %414 = vmatpush1.msra.mxu0 0.0
  %415 = vmatprep.subr.mxu0 0.0
  %416 = vmatpush1.msra.mxu0 0.0
  %417 = vmatprep.subr.mxu0 0.0
  %418 = vmatpush1.msra.mxu0 0.0
  %419 = vmatprep.subr.mxu0 0.0
  %420 = vmatpush1.msra.mxu0 0.0
  %421 = vmatprep.subr.mxu0 0.0
  %422 = vmatpush1.msra.mxu0 0.0
  %423 = vmatprep.subr.mxu0 0.0
  %424 = vmatpush1.msra.mxu0 0.0
  %425 = vmatprep.subr.mxu0 0.0
  %426 = vmatpush1.msra.mxu0 0.0
  %427 = vmatprep.subr.mxu0 0.0
  %428 = vmatpush1.msra.mxu0 0.0
  %429 = vmatprep.subr.mxu0 0.0
  %430 = vmatpush1.msra.mxu0 0.0
  %431 = vmatprep.subr.mxu0 0.0
  %432 = vmatpush1.msra.mxu0 0.0
  %433 = vmatprep.subr.mxu0 0.0
  %434 = vmatpush1.msra.mxu0 0.0
  %435 = vmatprep.subr.mxu0 0.0
  %436 = vmatpush1.msra.mxu0 0.0
  %437 = vmatprep.subr.mxu0 0.0
  %438 = vmatpush1.msra.mxu0 0.0
  %439 = vmatprep.subr.mxu0 0.0
  %440 = vmatpush1.msra.mxu0 0.0
  %441 = vmatprep.subr.mxu0 0.0
  %442 = vmatpush1.msra.mxu0 0.0
  %443 = vmatprep.subr.mxu0 0.0
  %444 = vmatpush1.msra.mxu0 0.0
  %445 = vmatprep.subr.mxu0 0.0
  %446 = vmatpush1.msra.mxu0 0.0
  %447 = vmatprep.subr.mxu0 0.0
  %448 = vmatpush1.msra.mxu0 0.0
  %449 = vmatprep.subr.mxu0 0.0
  %450 = vmatpush1.msra.mxu0 0.0
  %451 = vmatprep.subr.mxu0 0.0
  %452 = vmatpush1.msra.mxu0 0.0
  %453 = vmatprep.subr.mxu0 0.0
  %454 = vmatpush1.msra.mxu0 0.0
  %455 = vmatprep.subr.mxu0 0.0
  %456 = vmatpush1.msra.mxu0 0.0
  %457 = vmatprep.subr.mxu0 0.0
  %458 = vmatpush1.msra.mxu0 0.0
  %459 = vmatprep.subr.mxu0 0.0
  %460 = vmatpush1.msra.mxu0 0.0
  %461 = vmatprep.mubr.f32.mxu0 0.0
  %462 = vmatmul.mubr.f32.gmra.mrb[0].mxu0 %v388
  %v463 = vpop.f32.mrb[0].mxu0
  %v464 = vadd.f32 0.0, %v463
  %v465 = vpop.f32.mrb[0].mxu0
  %v466 = vadd.f32 0.0, %v465
  %467 = vdwg.mxu0
  %s468 = smul.u32 0, 2
  %v471 = vcombine.low %v464, %v466
  %s473 = smul.u32 %s468, 2
  %s474 = smul.addr %s473, 4
  %s475 = scalar_lea.vmem %s5, %s474
  %476 = vst [vmem:[%s475] sm:$0xff] %v471
  %s477 = scalar_lea.vmem [#allocation3], 80
  %v478 = vld [vmem:[%s477] sm:$0xff]
  %v479 = vld [vmem:[%s477 + $0x8] sm:$0xff]
  %v480 = vld [vmem:[%s477 + $0x10] sm:$0xff]
  %v481 = vld [vmem:[%s477 + $0x18] sm:$0xff]
  %v482 = vld [vmem:[%s477 + $0x20] sm:$0xff]
  %v483 = vld [vmem:[%s477 + $0x28] sm:$0xff]
  %v484 = vld [vmem:[%s477 + $0x30] sm:$0xff]
  %v485 = vld [vmem:[%s477 + $0x38] sm:$0xff]
  %v486 = vld [vmem:[%s477 + $0x40] sm:$0xf]
  %v487 = vld [vmem:[%s477 + $0x48] sm:$0xf]
  %v489 = vsel %vm390, %v486, 0
  %v492 = vsel %vm390, %v487, 0
  %494 = vmatprep.subr.mxu0 %v479
  %495 = vmatpush1.msra.mxu0 %v478
  %496 = vmatprep.subr.mxu0 %v481
  %497 = vmatpush1.msra.mxu0 %v480
  %498 = vmatprep.subr.mxu0 %v483
  %499 = vmatpush1.msra.mxu0 %v482
  %500 = vmatprep.subr.mxu0 %v485
  %501 = vmatpush1.msra.mxu0 %v484
  %502 = vmatprep.subr.mxu0 %v492
  %503 = vmatpush1.msra.mxu0 %v489
  %504 = vmatprep.subr.mxu0 0.0
  %505 = vmatpush1.msra.mxu0 0.0
  %506 = vmatprep.subr.mxu0 0.0
  %507 = vmatpush1.msra.mxu0 0.0
  %508 = vmatprep.subr.mxu0 0.0
  %509 = vmatpush1.msra.mxu0 0.0
  %510 = vmatprep.subr.mxu0 0.0
  %511 = vmatpush1.msra.mxu0 0.0
  %512 = vmatprep.subr.mxu0 0.0
  %513 = vmatpush1.msra.mxu0 0.0
  %514 = vmatprep.subr.mxu0 0.0
  %515 = vmatpush1.msra.mxu0 0.0
  %516 = vmatprep.subr.mxu0 0.0
  %517 = vmatpush1.msra.mxu0 0.0
  %518 = vmatprep.subr.mxu0 0.0
  %519 = vmatpush1.msra.mxu0 0.0
  %520 = vmatprep.subr.mxu0 0.0
  %521 = vmatpush1.msra.mxu0 0.0
  %522 = vmatprep.subr.mxu0 0.0
  %523 = vmatpush1.msra.mxu0 0.0
  %524 = vmatprep.subr.mxu0 0.0
  %525 = vmatpush1.msra.mxu0 0.0
  %526 = vmatprep.subr.mxu0 0.0
  %527 = vmatpush1.msra.mxu0 0.0
  %528 = vmatprep.subr.mxu0 0.0
  %529 = vmatpush1.msra.mxu0 0.0
  %530 = vmatprep.subr.mxu0 0.0
  %531 = vmatpush1.msra.mxu0 0.0
  %532 = vmatprep.subr.mxu0 0.0
  %533 = vmatpush1.msra.mxu0 0.0
  %534 = vmatprep.subr.mxu0 0.0
  %535 = vmatpush1.msra.mxu0 0.0
  %536 = vmatprep.subr.mxu0 0.0
  %537 = vmatpush1.msra.mxu0 0.0
  %538 = vmatprep.subr.mxu0 0.0
  %539 = vmatpush1.msra.mxu0 0.0
  %540 = vmatprep.subr.mxu0 0.0
  %541 = vmatpush1.msra.mxu0 0.0
  %542 = vmatprep.subr.mxu0 0.0
  %543 = vmatpush1.msra.mxu0 0.0
  %544 = vmatprep.subr.mxu0 0.0
  %545 = vmatpush1.msra.mxu0 0.0
  %546 = vmatprep.subr.mxu0 0.0
  %547 = vmatpush1.msra.mxu0 0.0
  %548 = vmatprep.subr.mxu0 0.0
  %549 = vmatpush1.msra.mxu0 0.0
  %550 = vmatprep.subr.mxu0 0.0
  %551 = vmatpush1.msra.mxu0 0.0
  %552 = vmatprep.subr.mxu0 0.0
  %553 = vmatpush1.msra.mxu0 0.0
  %554 = vmatprep.subr.mxu0 0.0
  %555 = vmatpush1.msra.mxu0 0.0
  %556 = vmatprep.subr.mxu0 0.0
  %557 = vmatpush1.msra.mxu0 0.0
  %558 = vmatprep.mubr.f32.mxu0 0.0
  %559 = vmatmul.mubr.f32.gmra.mrb[0].mxu0 %v388
  %v560 = vpop.f32.mrb[0].mxu0
  %v561 = vadd.f32 0.0, %v560
  %v562 = vpop.f32.mrb[0].mxu0
  %v563 = vadd.f32 0.0, %v562
  %564 = vdwg.mxu0
  %s565 = sadd.s32 %s468, 1
  %v568 = vcombine.low %v561, %v563
  %s570 = smul.u32 %s565, 2
  %s571 = smul.addr %s570, 4
  %s572 = scalar_lea.vmem %s5, %s571
  %573 = vst [vmem:[%s572] sm:$0xff] %v568
  // Predicated region
  $region26: #{residual_block.2} parent=0 // pred_check
    %p574 = pneg %p20
  $region27: #{residual_block.2} parent=0 // pred_check_branch
    %576 = sbr.rel (%p574) target = $region29
  $region28: #{residual_block.2} parent=0 // pred_region
    %v577 = vld [vmem:[%s5] sm:$0xff]
    %v578 = vld [vmem:[%s5 + $0x8] sm:$0xff]
    %v581 = vcombine.high %v577, %v577
    %v582 = vcombine.high %v578, %v578
    %v585 = vsel %vm390, %v577, 0.0
    %v586 = vsel %vm390, %v581, 0.0
    %v587 = vadd.f32 %v585, %v586
    %588 = vadd.xlane.f32.xlu0 %v587
    %v589 = vpop.xlane.xlu0 %588
    %v590 = vsel %vm390, %v578, 0.0
    %v591 = vsel %vm390, %v582, 0.0
    %v592 = vadd.f32 %v590, %v591
    %593 = vadd.xlane.f32.xlu0 %v592
    %v594 = vpop.xlane.xlu0 %593
    %v595 = vsel %vm390, %v589, 0.0
    %v596 = vsel %vm390, %v594, 0.0
    %v597 = vadd.f32 %v595, %v596
    %v598 = vmul.f32 %v597, 0.001953125
    %v601 = vunpack.c.l.s4 839922192
    %v602 = vunpack.c.0.s8 %v601
    %v603 = vlaneseq
    %v604 = vshrl.u32 %v603, 7
    %v605 = vsub.s32 %v602, %v604
    %v606 = vrot.slane %v598, %v605
    %v608 = vsub.f32 %v577, %v606
    %v609 = vsub.f32 %v578, %v606
    %v610 = vmul.f32 %v608, %v608
    %v611 = vmul.f32 %v609, %v609
    %v614 = vcombine.high %v610, %v610
    %v615 = vcombine.high %v611, %v611
    %v618 = vsel %vm390, %v610, 0.0
    %v619 = vsel %vm390, %v614, 0.0
    %v620 = vadd.f32 %v618, %v619
    %621 = vadd.xlane.f32.xlu0 %v620
    %v622 = vpop.xlane.xlu0 %621
    %v623 = vsel %vm390, %v611, 0.0
    %v624 = vsel %vm390, %v615, 0.0
    %v625 = vadd.f32 %v623, %v624
    %626 = vadd.xlane.f32.xlu0 %v625
    %v627 = vpop.xlane.xlu0 %626
    %v628 = vsel %vm390, %v622, 0.0
    %v629 = vsel %vm390, %v627, 0.0
    %v630 = vadd.f32 %v628, %v629
    %v631 = vmul.f32 %v630, 0.001953125
    %v632 = vld [vmem:[%s3] sm:$0xf]
    %v633 = vadd.f32 %v631, 1e-05
    %v634 = vrsqrt.pop %v633
    %v635 = vmul.f32 %v632, %v634
    %v636 = vld [vmem:[%s4] sm:$0xf]
    %v637 = vmul.f32 %v598, %v635
    %v638 = vsub.f32 %v636, %v637
    %640 = vset.pattern.permute.xlu0 0
    %641 = vperm.xlu0 %640, %v635
    %v642 = vpop.permute.xlu0 %641
    %v644 = vunpack.c.l.s4 839922192
    %v645 = vunpack.c.0.s8 %v644
    %v646 = vlaneseq
    %v647 = vshrl.u32 %v646, 7
    %v648 = vsub.s32 %v645, %v647
    %v649 = vrot.slane %v642, %v648
    %v651 = vmul.f32 %v577, %v649
    %v652 = vmul.f32 %v578, %v649
    %654 = vset.pattern.permute.xlu0 0
    %655 = vperm.xlu0 %654, %v638
    %v656 = vpop.permute.xlu0 %655
    %v658 = vunpack.c.l.s4 839922192
    %v659 = vunpack.c.0.s8 %v658
    %v660 = vlaneseq
    %v661 = vshrl.u32 %v660, 7
    %v662 = vsub.s32 %v659, %v661
    %v663 = vrot.slane %v656, %v662
    %v665 = vadd.f32 %v651, %v663
    %v666 = vadd.f32 %v652, %v663
    %v667 = vmax.f32 %v665, 0.0
    %v668 = vmax.f32 %v666, 0.0
    %669 = vst [vmem:[%s5] sm:$0xff] %v667
    %670 = vst [vmem:[%s5 + $0x8] sm:$0xff] %v668
  $region29: #{residual_block.2} parent=0 // pred_fallthru
    _
  // Predicated region
  $region30: #{residual_block.2} parent=0 // pred_check
    _
  $region31: #{residual_block.2} parent=0 // pred_check_branch
    %672 = sbr.rel (0) target = $region33
  $region32: #{residual_block.2} parent=0 // pred_region
    _
  $region33: #{residual_block.2} parent=0 // pred_fallthru
    _
  // Predicated region
  $region34: #{residual_block.2} parent=0 // pred_check
    _
  $region35: #{residual_block.2} parent=0 // pred_check_branch
    %674 = sbr.rel (0) target = $region37
  $region36: #{residual_block.2} parent=0 // pred_region
    _
  $region37: #{residual_block.2} parent=0 // pred_fallthru
    _

</llo_original>
